<compile_context>
chip_gen: v6e
topology: v6e:2x2x1
jax: 0.10.0
libtpu: 0.0.40
codegen_flags: <defaults>
</compile_context>

<pallas_src>
import functools
import math

import jax
import jax.numpy as jnp
from jax.experimental import pallas as pl
from jax.experimental.pallas import tpu as pltpu

_MXU_DTYPE = jnp.bfloat16    # set to jnp.float32 for exact-precision debugging


# ----------------------------- fused Pallas kernel ---------------------------

def _st_block_kernel(x_ref, w1_ref, b1_ref, ws_ref, sb_ref,
                     w2_ref, b2_ref, g_ref, lnb_ref, o_ref,
                     *, kt, T, nc1, nc2, add_res1, add_res2, eps=1e-5):
    f32 = jnp.float32
    cdt = _MXU_DTYPE
    T1 = T - kt + 1            # time steps after tconv1
    T2 = T1 - kt + 1           # time steps after tconv2

    x = x_ref[0]               # (T, n*c0): rows = time, lanes = (node, channel)

    # ---- temporal conv 1 (GLU).  kt taps = row-shifted slabs dotted against
    #      block-diagonal lane-space weights.  The `align` residual (zero-pad /
    #      learned 1x1) is folded into the tap-(kt-1) weights in the wrapper, so no
    #      extra matmul is needed here (review item 2). ----
    acc = jnp.zeros((T1, 2 * nc1), f32)
    for tau in range(kt):                                   # kt small & static
        xt = x[tau:tau + T1].astype(cdt)
        acc = acc + jnp.dot(xt, w1_ref[tau], preferred_element_type=f32)
    acc = acc + b1_ref[...]
    p = acc[:, :nc1]                                        # 128-aligned lane split
    q = acc[:, nc1:]
    if add_res1:                                            # c0 == c1: exact f32 add
        p = p + x[kt - 1:]
    x1 = p * jax.nn.sigmoid(q)                              # (T1, n*c1) f32

    # ---- spatio (Chebyshev) conv: Lk and theta pre-contracted in the wrapper into
    #      ONE dense (n*c1, n*c1) lane operator -> a single MXU dot (review item 1).
    xs = jnp.dot(x1.astype(cdt), ws_ref[...], preferred_element_type=f32)
    xs = jnp.maximum(xs + sb_ref[...] + x1, 0.0)            # f32 residual, (T1, n*c1)

    # ---- temporal conv 2 (ReLU) ----
    acc2 = jnp.zeros((T2, nc2), f32)
    for tau in range(kt):
        xt = xs[tau:tau + T2].astype(cdt)
        acc2 = acc2 + jnp.dot(xt, w2_ref[tau], preferred_element_type=f32)
    acc2 = acc2 + b2_ref[...]
    if add_res2:                                            # c1 == c2: exact f32 add
        acc2 = acc2 + xs[kt - 1:]
    y = jnp.maximum(acc2, 0.0)                              # (T2, n*c2)

    # ---- LayerNorm over the (n, c2) lane slab of each remaining time step:
    #      single-pass lane reductions over 256-lane rows (review item 7). ----
    mu = jnp.sum(y, axis=1, keepdims=True) * (1.0 / nc2)
    d = y - mu
    var = jnp.sum(d * d, axis=1, keepdims=True) * (1.0 / nc2)
    out = d * jax.lax.rsqrt(var + eps) * g_ref[...] + lnb_ref[...]

    # dropout == identity at inference.
    # TODO(synk): training-mode dropout (RNG masking) is not implemented.
    o_ref[...] = out[None]                                  # lane-dense (1, T2, n*c2)


# ------------------------------- wrapper --------------------------------------

def _align_params(p, c_in, c_out):
    """Return (A, b) such that align(x) == x @ A + b, matching PyTorch `align`."""
    if c_in > c_out:                    # learned 1x1 conv
        return p["align_w"], p["align_b"]
    if c_in < c_out:                    # zero-pad trailing channels -> [I | 0]
        return (jnp.eye(c_in, c_out, dtype=jnp.float32),
                jnp.zeros((1, c_out), jnp.float32))
    return jnp.eye(c_in, dtype=jnp.float32), jnp.zeros((1, c_out), jnp.float32)


def _block_diag(w, n):
    """Lane-space form of a per-node (c_in -> c_out) map: BD[m*ci+i, m*co+o] = w[i,o]."""
    ci, co = w.shape
    eye = jnp.eye(n, dtype=w.dtype)
    return jnp.einsum('ab,io->aibo', eye, w).reshape(n * ci, n * co)


def st_conv_block(x_nchw, params, Lk, ks, kt, c):
    """Fused Pallas forward of st_conv_block.  x_nchw: [B, c0, T, n] (PyTorch NCHW)."""
    c0, c1, c2 = c
    B, c0_in, T, n = x_nchw.shape
    assert c0_in == c0
    T1 = T - kt + 1
    T2 = T1 - kt + 1
    nc0, nc1, nc2 = n * c0, n * c1, n * c2
    cdt = _MXU_DTYPE

    # NCHW -> lane-dense rows [B, T, n*c0] (time -> sublanes, (node, channel) -> lanes).
    x = jnp.transpose(x_nchw, (0, 2, 3, 1)).reshape(B, T, nc0)

    p1, ps, p2 = params["tconv1"], params["sconv"], params["tconv2"]

    # --- tconv1 (GLU): block-diag weights per tap; align residual folded into tap kt-1.
    w1p = p1["w1"].reshape(kt, c0, c1)
    w1q = p1["w2"].reshape(kt, c0, c1)
    a1, ab1 = _align_params(p1, c0, c1)
    add_res1 = (c0 == c1)
    wp = jnp.stack([_block_diag(w1p[t], n) for t in range(kt)])      # (kt, nc0, nc1)
    wq = jnp.stack([_block_diag(w1q[t], n) for t in range(kt)])
    if not add_res1:
        wp = wp.at[kt - 1].add(_block_diag(a1, n))
    big_w1 = jnp.concatenate([wp, wq], axis=2).astype(cdt)           # (kt, nc0, 2*nc1)
    bias1 = jnp.concatenate([jnp.tile(p1["b1"] + ab1, (1, n)),
                             jnp.tile(p1["b2"], (1, n))], axis=1)    # (1, 2*nc1) f32

    # --- spatio conv: contract Lk (ks,n,n) with theta (ks,c1,c1) once, outside the
    #     kernel, into a dense (n*c1, n*c1) operator over the (node, channel) lanes.
    big_ws = jnp.einsum('knm,kio->mino', Lk, ps["theta"]).reshape(nc1, nc1).astype(cdt)
    sbias = jnp.tile(ps["b"], (1, n))                                # (1, nc1) f32

    # --- tconv2 (ReLU): block-diag weights; identity align stays an exact f32 add.
    w2r = p2["w"].reshape(kt, c1, c2)
    a2, ab2 = _align_params(p2, c1, c2)
    add_res2 = (c1 == c2)
    w2s = jnp.stack([_block_diag(w2r[t], n) for t in range(kt)])     # (kt, nc1, nc2)
    if not add_res2:
        w2s = w2s.at[kt - 1].add(_block_diag(a2, n))
    big_w2 = w2s.astype(cdt)
    bias2 = jnp.tile(p2["b"] + ab2, (1, n))                          # (1, nc2) f32

    g_l = params["ln_g"].reshape(1, nc2)
    b_l = params["ln_b"].reshape(1, nc2)

    operands = [x, big_w1, bias1, big_ws, sbias, big_w2, bias2, g_l, b_l]
    in_specs = [pl.BlockSpec((1, T, nc0), lambda b: (b, 0, 0))]
    for a in operands[1:]:          # weights/biases: whole array, constant index map
        in_specs.append(pl.BlockSpec(a.shape, lambda b, nd=a.ndim: (0,) * nd))

    kern = functools.partial(_st_block_kernel, kt=kt, T=T, nc1=nc1, nc2=nc2,
                             add_res1=add_res1, add_res2=add_res2)
    out = pl.pallas_call(
        kern,
        out_shape=jax.ShapeDtypeStruct((B, T2, nc2), jnp.float32),
        grid=(B,),                   # 2 steps -> both v7x TensorCores; cheap on 1-TC chips
        in_specs=in_specs,
        out_specs=pl.BlockSpec((1, T2, nc2), lambda b: (b, 0, 0)),
        compiler_params=pltpu.CompilerParams(dimension_semantics=("parallel",)),
    )(*operands)
    # lane-dense (B, T2, n*c2) -> NCHW [B, c2, T2, n]
    return jnp.transpose(out.reshape(B, T2, n, c2), (0, 3, 1, 2))


# ----------------------- deterministic parameter init -------------------------

def _uniform(key, shape, fan_in):
    bound = 1.0 / math.sqrt(fan_in)
    return jax.random.uniform(key, shape, jnp.float32, -bound, bound)


def init_block_params(key, ks, kt, n, c):
    c0, c1, c2 = c
    k = jax.random.split(key, 10)
    p = {
        "tconv1": {"w1": _uniform(k[0], (kt * c0, c1), kt * c0),
                   "b1": _uniform(k[1], (1, c1), kt * c0),
                   "w2": _uniform(k[2], (kt * c0, c1), kt * c0),
                   "b2": _uniform(k[3], (1, c1), kt * c0)},
        "sconv": {"theta": _uniform(k[4], (ks, c1, c1), c1 * ks),
                  "b": _uniform(k[5], (1, c1), c1 * ks)},
        "tconv2": {"w": _uniform(k[6], (kt * c1, c2), kt * c1),
                   "b": _uniform(k[7], (1, c2), kt * c1)},
        "ln_g": jnp.ones((n, c2), jnp.float32),
        "ln_b": jnp.zeros((n, c2), jnp.float32),
    }
    if c0 > c1:
        p["tconv1"]["align_w"] = _uniform(k[8], (c0, c1), c0)
        p["tconv1"]["align_b"] = _uniform(k[9], (1, c1), c0)
    if c1 > c2:
        p["tconv2"]["align_w"] = _uniform(jax.random.fold_in(k[8], 1), (c1, c2), c1)
        p["tconv2"]["align_b"] = _uniform(jax.random.fold_in(k[9], 1), (1, c2), c1)
    return p


# -------------------- pure-JAX reference (NCHW, mirrors PyTorch) ---------------

def _ref_tconv(x, p, kt, c_in, c_out, act):
    T = x.shape[2]
    if c_in > c_out:
        x_al = (jnp.einsum("bitn,io->botn", x, p["align_w"])
                + p["align_b"].reshape(1, c_out, 1, 1))
    elif c_in < c_out:
        x_al = jnp.pad(x, ((0, 0), (0, c_out - c_in), (0, 0), (0, 0)))
    else:
        x_al = x
    x_in = x_al[:, :, kt - 1:, :]

    def conv(W2d, b):
        W = W2d.reshape(kt, c_in, c_out)
        out = sum(jnp.einsum("bitn,io->botn", x[:, :, tau:T - kt + 1 + tau, :],
                             W[tau]) for tau in range(kt))
        return out + b.reshape(1, c_out, 1, 1)

    if act == "GLU":
        return (conv(p["w1"], p["b1"]) + x_in) * jax.nn.sigmoid(conv(p["w2"], p["b2"]))
    q = conv(p["w"], p["b"]) + x_in
    return jnp.maximum(q, 0.0) if act == "relu" else jax.nn.sigmoid(q)


def _ref_sconv(x, p, Lk):
    x_c = jnp.einsum("knm,bitm->bitkn", Lk, x)
    x_gc = (jnp.einsum("kio,bitkn->botn", p["theta"], x_c)
            + p["b"].reshape(1, -1, 1, 1))
    return jnp.maximum(x_gc + x, 0.0)


def _ref_ln(x, g, b):
    xp = jnp.transpose(x, (0, 2, 3, 1))
    mu = jnp.mean(xp, axis=(-2, -1), keepdims=True)
    var = jnp.mean((xp - mu) ** 2, axis=(-2, -1), keepdims=True)
    xn = (xp - mu) / jnp.sqrt(var + 1e-5) * g + b
    return jnp.transpose(xn, (0, 3, 1, 2))


def ref_st_conv_block(x, params, Lk, ks, kt, c):
    c0, c1, c2 = c
    x = _ref_tconv(x, params["tconv1"], kt, c0, c1, "GLU")
    x = _ref_sconv(x, params["sconv"], Lk)
    x = _ref_tconv(x, params["tconv2"], kt, c1, c2, "relu")
    x = _ref_ln(x, params["ln_g"], params["ln_b"])
    return x  # dropout == identity (inference)


# ------------------------------------ main -------------------------------------

if __name__ == "__main__":
    ks, kt = 3, 3
    c = (4, 16, 16)               # (c_in, c_hidden, c_out) of the ST block
    B, T, n = 2, 16, 16           # input NCHW: [B, c[0], T, n]
    # dropout p only matters in training; inference forward is identity.

    key = jax.random.PRNGKey(0)
    k_x, k_p, k_l = jax.random.split(key, 3)
    x = jax.random.normal(k_x, (B, c[0], T, n), jnp.float32)            # NCHW
    Lk = jax.random.uniform(k_l, (ks, n, n), jnp.float32, -1.0, 1.0) / n
    params = init_block_params(k_p, ks, kt, n, c)

    fwd = jax.jit(lambda xx: st_conv_block(xx, params, Lk, ks, kt, c))
    out = jax.block_until_ready(fwd(x))
    T_out = T - 2 * (kt - 1)
    assert out.shape == (B, c[2], T_out, n), out.shape

    with jax.default_matmul_precision("highest"):
        ref = jax.block_until_ready(ref_st_conv_block(x, params, Lk, ks, kt, c))
    err_max = float(jnp.max(jnp.abs(out - ref)))
    err_mean = float(jnp.mean(jnp.abs(out - ref)))
    # bf16 MXU operands with f32 accumulation: expect ~1e-3 mean / ~1e-2 max abs err.
    assert err_max < 5e-2 and err_mean < 1e-2, (err_max, err_mean)

    print("KERNEL_OK")
</pallas_src>

<mosaic_0001>
module attributes {stable_mosaic.version = 11 : i64} {
  func.func @_st_block_kernel(%arg0: i32, %arg1: memref<1x16x64xf32, #tpu.memory_space<vmem>>, %arg2: memref<3x64x512xbf16, #tpu.memory_space<vmem>>, %arg3: memref<1x512xf32, #tpu.memory_space<vmem>>, %arg4: memref<256x256xbf16, #tpu.memory_space<vmem>>, %arg5: memref<1x256xf32, #tpu.memory_space<vmem>>, %arg6: memref<3x256x256xbf16, #tpu.memory_space<vmem>>, %arg7: memref<1x256xf32, #tpu.memory_space<vmem>>, %arg8: memref<1x256xf32, #tpu.memory_space<vmem>>, %arg9: memref<1x256xf32, #tpu.memory_space<vmem>>, %arg10: memref<1x12x256xf32, #tpu.memory_space<vmem>>) attributes {dimension_semantics = [#tpu.dimension_semantics<parallel>], iteration_bounds = array<i64: 2>, scalar_prefetch = 0 : i64, scratch_operands = 0 : i64, tpu.core_type = #tpu.core_type<tc>, window_params = [{transform_indices = @transform_0, window_bounds = array<i64: 1, 16, 64>}, {pipeline_mode = #tpu.pipeline_mode<synchronous>, transform_indices = @transform_1, window_bounds = array<i64: 3, 64, 512>}, {pipeline_mode = #tpu.pipeline_mode<synchronous>, transform_indices = @transform_2, window_bounds = array<i64: 1, 512>}, {pipeline_mode = #tpu.pipeline_mode<synchronous>, transform_indices = @transform_3, window_bounds = array<i64: 256, 256>}, {pipeline_mode = #tpu.pipeline_mode<synchronous>, transform_indices = @transform_4, window_bounds = array<i64: 1, 256>}, {pipeline_mode = #tpu.pipeline_mode<synchronous>, transform_indices = @transform_5, window_bounds = array<i64: 3, 256, 256>}, {pipeline_mode = #tpu.pipeline_mode<synchronous>, transform_indices = @transform_6, window_bounds = array<i64: 1, 256>}, {pipeline_mode = #tpu.pipeline_mode<synchronous>, transform_indices = @transform_7, window_bounds = array<i64: 1, 256>}, {pipeline_mode = #tpu.pipeline_mode<synchronous>, transform_indices = @transform_8, window_bounds = array<i64: 1, 256>}, {transform_indices = @transform_9, window_bounds = array<i64: 1, 12, 256>}]} {
    %c0 = arith.constant 0 : index
    %c0_0 = arith.constant 0 : index
    %c0_1 = arith.constant 0 : index
    %0 = vector.load %arg1[%c0, %c0_0, %c0_1] : memref<1x16x64xf32, #tpu.memory_space<vmem>>, vector<1x16x64xf32>
    %1 = vector.shape_cast %0 : vector<1x16x64xf32> to vector<16x64xf32>
    %cst = arith.constant 0.000000e+00 : f32
    %2 = vector.broadcast %cst : f32 to vector<14x512xf32>
    %3 = vector.extract_strided_slice %1 {offsets = [0, 0], sizes = [14, 64], strides = [1, 1]} : vector<16x64xf32> to vector<14x64xf32>
    %4 = arith.truncf %3 : vector<14x64xf32> to vector<14x64xbf16>
    %c0_2 = arith.constant 0 : index
    %c0_3 = arith.constant 0 : index
    %c0_4 = arith.constant 0 : index
    %5 = vector.load %arg2[%c0_2, %c0_3, %c0_4] : memref<3x64x512xbf16, #tpu.memory_space<vmem>>, vector<1x64x512xbf16>
    %6 = vector.shape_cast %5 : vector<1x64x512xbf16> to vector<64x512xbf16>
    %cst_5 = arith.constant dense<0.000000e+00> : vector<14x512xf32>
    %7 = tpu.matmul %4, %6, %cst_5 {dimension_numbers = #tpu.dot_dimension_numbers<[1], [0], [0], [1], [0, 0, 1, 1], [], []>} : vector<14x64xbf16>, vector<64x512xbf16>, vector<14x512xf32> -> vector<14x512xf32>
    %8 = arith.addf %2, %7 : vector<14x512xf32>
    %9 = vector.extract_strided_slice %1 {offsets = [1, 0], sizes = [14, 64], strides = [1, 1]} : vector<16x64xf32> to vector<14x64xf32>
    %10 = arith.truncf %9 : vector<14x64xf32> to vector<14x64xbf16>
    %c1 = arith.constant 1 : index
    %c0_6 = arith.constant 0 : index
    %c0_7 = arith.constant 0 : index
    %11 = vector.load %arg2[%c1, %c0_6, %c0_7] : memref<3x64x512xbf16, #tpu.memory_space<vmem>>, vector<1x64x512xbf16>
    %12 = vector.shape_cast %11 : vector<1x64x512xbf16> to vector<64x512xbf16>
    %cst_8 = arith.constant dense<0.000000e+00> : vector<14x512xf32>
    %13 = tpu.matmul %10, %12, %cst_8 {dimension_numbers = #tpu.dot_dimension_numbers<[1], [0], [0], [1], [0, 0, 1, 1], [], []>} : vector<14x64xbf16>, vector<64x512xbf16>, vector<14x512xf32> -> vector<14x512xf32>
    %14 = arith.addf %8, %13 : vector<14x512xf32>
    %15 = vector.extract_strided_slice %1 {offsets = [2, 0], sizes = [14, 64], strides = [1, 1]} : vector<16x64xf32> to vector<14x64xf32>
    %16 = arith.truncf %15 : vector<14x64xf32> to vector<14x64xbf16>
    %c2 = arith.constant 2 : index
    %c0_9 = arith.constant 0 : index
    %c0_10 = arith.constant 0 : index
    %17 = vector.load %arg2[%c2, %c0_9, %c0_10] : memref<3x64x512xbf16, #tpu.memory_space<vmem>>, vector<1x64x512xbf16>
    %18 = vector.shape_cast %17 : vector<1x64x512xbf16> to vector<64x512xbf16>
    %cst_11 = arith.constant dense<0.000000e+00> : vector<14x512xf32>
    %19 = tpu.matmul %16, %18, %cst_11 {dimension_numbers = #tpu.dot_dimension_numbers<[1], [0], [0], [1], [0, 0, 1, 1], [], []>} : vector<14x64xbf16>, vector<64x512xbf16>, vector<14x512xf32> -> vector<14x512xf32>
    %20 = arith.addf %14, %19 : vector<14x512xf32>
    %c0_12 = arith.constant 0 : index
    %c0_13 = arith.constant 0 : index
    %21 = vector.load %arg3[%c0_12, %c0_13] : memref<1x512xf32, #tpu.memory_space<vmem>>, vector<1x512xf32>
    %22 = vector.broadcast %21 : vector<1x512xf32> to vector<14x512xf32>
    %23 = arith.addf %20, %22 : vector<14x512xf32>
    %24 = vector.extract_strided_slice %23 {offsets = [0, 0], sizes = [14, 256], strides = [1, 1]} : vector<14x512xf32> to vector<14x256xf32>
    %25 = vector.extract_strided_slice %23 {offsets = [0, 256], sizes = [14, 256], strides = [1, 1]} : vector<14x512xf32> to vector<14x256xf32>
    %26 = arith.negf %25 : vector<14x256xf32>
    %27 = math.exp %26 : vector<14x256xf32>
    %cst_14 = arith.constant 1.000000e+00 : f32
    %28 = vector.broadcast %cst_14 : f32 to vector<14x256xf32>
    %29 = arith.addf %28, %27 : vector<14x256xf32>
    %30 = arith.divf %28, %29 : vector<14x256xf32>
    %31 = arith.mulf %24, %30 : vector<14x256xf32>
    %32 = arith.truncf %31 : vector<14x256xf32> to vector<14x256xbf16>
    %c0_15 = arith.constant 0 : index
    %c0_16 = arith.constant 0 : index
    %33 = vector.load %arg4[%c0_15, %c0_16] : memref<256x256xbf16, #tpu.memory_space<vmem>>, vector<256x256xbf16>
    %cst_17 = arith.constant dense<0.000000e+00> : vector<14x256xf32>
    %34 = tpu.matmul %32, %33, %cst_17 {dimension_numbers = #tpu.dot_dimension_numbers<[1], [0], [0], [1], [0, 0, 1, 1], [], []>} : vector<14x256xbf16>, vector<256x256xbf16>, vector<14x256xf32> -> vector<14x256xf32>
    %c0_18 = arith.constant 0 : index
    %c0_19 = arith.constant 0 : index
    %35 = vector.load %arg5[%c0_18, %c0_19] : memref<1x256xf32, #tpu.memory_space<vmem>>, vector<1x256xf32>
    %36 = vector.broadcast %35 : vector<1x256xf32> to vector<14x256xf32>
    %37 = arith.addf %34, %36 : vector<14x256xf32>
    %38 = arith.addf %37, %31 : vector<14x256xf32>
    %cst_20 = arith.constant 0.000000e+00 : f32
    %39 = vector.broadcast %cst_20 : f32 to vector<14x256xf32>
    %40 = arith.maximumf %38, %39 : vector<14x256xf32>
    %cst_21 = arith.constant 0.000000e+00 : f32
    %41 = vector.broadcast %cst_21 : f32 to vector<12x256xf32>
    %42 = vector.extract_strided_slice %40 {offsets = [0, 0], sizes = [12, 256], strides = [1, 1]} : vector<14x256xf32> to vector<12x256xf32>
    %43 = arith.truncf %42 : vector<12x256xf32> to vector<12x256xbf16>
    %c0_22 = arith.constant 0 : index
    %c0_23 = arith.constant 0 : index
    %c0_24 = arith.constant 0 : index
    %44 = vector.load %arg6[%c0_22, %c0_23, %c0_24] : memref<3x256x256xbf16, #tpu.memory_space<vmem>>, vector<1x256x256xbf16>
    %45 = vector.shape_cast %44 : vector<1x256x256xbf16> to vector<256x256xbf16>
    %cst_25 = arith.constant dense<0.000000e+00> : vector<12x256xf32>
    %46 = tpu.matmul %43, %45, %cst_25 {dimension_numbers = #tpu.dot_dimension_numbers<[1], [0], [0], [1], [0, 0, 1, 1], [], []>} : vector<12x256xbf16>, vector<256x256xbf16>, vector<12x256xf32> -> vector<12x256xf32>
    %47 = arith.addf %41, %46 : vector<12x256xf32>
    %48 = vector.extract_strided_slice %40 {offsets = [1, 0], sizes = [12, 256], strides = [1, 1]} : vector<14x256xf32> to vector<12x256xf32>
    %49 = arith.truncf %48 : vector<12x256xf32> to vector<12x256xbf16>
    %c1_26 = arith.constant 1 : index
    %c0_27 = arith.constant 0 : index
    %c0_28 = arith.constant 0 : index
    %50 = vector.load %arg6[%c1_26, %c0_27, %c0_28] : memref<3x256x256xbf16, #tpu.memory_space<vmem>>, vector<1x256x256xbf16>
    %51 = vector.shape_cast %50 : vector<1x256x256xbf16> to vector<256x256xbf16>
    %cst_29 = arith.constant dense<0.000000e+00> : vector<12x256xf32>
    %52 = tpu.matmul %49, %51, %cst_29 {dimension_numbers = #tpu.dot_dimension_numbers<[1], [0], [0], [1], [0, 0, 1, 1], [], []>} : vector<12x256xbf16>, vector<256x256xbf16>, vector<12x256xf32> -> vector<12x256xf32>
    %53 = arith.addf %47, %52 : vector<12x256xf32>
    %54 = vector.extract_strided_slice %40 {offsets = [2, 0], sizes = [12, 256], strides = [1, 1]} : vector<14x256xf32> to vector<12x256xf32>
    %55 = arith.truncf %54 : vector<12x256xf32> to vector<12x256xbf16>
    %c2_30 = arith.constant 2 : index
    %c0_31 = arith.constant 0 : index
    %c0_32 = arith.constant 0 : index
    %56 = vector.load %arg6[%c2_30, %c0_31, %c0_32] : memref<3x256x256xbf16, #tpu.memory_space<vmem>>, vector<1x256x256xbf16>
    %57 = vector.shape_cast %56 : vector<1x256x256xbf16> to vector<256x256xbf16>
    %cst_33 = arith.constant dense<0.000000e+00> : vector<12x256xf32>
    %58 = tpu.matmul %55, %57, %cst_33 {dimension_numbers = #tpu.dot_dimension_numbers<[1], [0], [0], [1], [0, 0, 1, 1], [], []>} : vector<12x256xbf16>, vector<256x256xbf16>, vector<12x256xf32> -> vector<12x256xf32>
    %59 = arith.addf %53, %58 : vector<12x256xf32>
    %c0_34 = arith.constant 0 : index
    %c0_35 = arith.constant 0 : index
    %60 = vector.load %arg7[%c0_34, %c0_35] : memref<1x256xf32, #tpu.memory_space<vmem>>, vector<1x256xf32>
    %61 = vector.broadcast %60 : vector<1x256xf32> to vector<12x256xf32>
    %62 = arith.addf %59, %61 : vector<12x256xf32>
    %63 = vector.extract_strided_slice %40 {offsets = [2, 0], sizes = [12, 256], strides = [1, 1]} : vector<14x256xf32> to vector<12x256xf32>
    %64 = arith.addf %62, %63 : vector<12x256xf32>
    %cst_36 = arith.constant 0.000000e+00 : f32
    %65 = vector.broadcast %cst_36 : f32 to vector<12x256xf32>
    %66 = arith.maximumf %64, %65 : vector<12x256xf32>
    %cst_37 = arith.constant dense<0.000000e+00> : vector<12xf32>
    %67 = vector.multi_reduction <add>, %66, %cst_37 [1] : vector<12x256xf32> to vector<12xf32>
    %68 = vector.shape_cast %67 : vector<12xf32> to vector<12x1xf32>
    %cst_38 = arith.constant 3.906250e-03 : f32
    %69 = vector.broadcast %cst_38 : f32 to vector<12x1xf32>
    %70 = arith.mulf %68, %69 : vector<12x1xf32>
    %71 = vector.broadcast %70 : vector<12x1xf32> to vector<12x256xf32>
    %72 = arith.subf %66, %71 : vector<12x256xf32>
    %73 = arith.mulf %72, %72 : vector<12x256xf32>
    %cst_39 = arith.constant dense<0.000000e+00> : vector<12xf32>
    %74 = vector.multi_reduction <add>, %73, %cst_39 [1] : vector<12x256xf32> to vector<12xf32>
    %75 = vector.shape_cast %74 : vector<12xf32> to vector<12x1xf32>
    %cst_40 = arith.constant 3.906250e-03 : f32
    %76 = vector.broadcast %cst_40 : f32 to vector<12x1xf32>
    %77 = arith.mulf %75, %76 : vector<12x1xf32>
    %cst_41 = arith.constant 9.99999974E-6 : f32
    %78 = vector.broadcast %cst_41 : f32 to vector<12x1xf32>
    %79 = arith.addf %77, %78 : vector<12x1xf32>
    %80 = math.rsqrt %79 : vector<12x1xf32>
    %81 = vector.broadcast %80 : vector<12x1xf32> to vector<12x256xf32>
    %82 = arith.mulf %72, %81 : vector<12x256xf32>
    %c0_42 = arith.constant 0 : index
    %c0_43 = arith.constant 0 : index
    %83 = vector.load %arg8[%c0_42, %c0_43] : memref<1x256xf32, #tpu.memory_space<vmem>>, vector<1x256xf32>
    %84 = vector.broadcast %83 : vector<1x256xf32> to vector<12x256xf32>
    %85 = arith.mulf %82, %84 : vector<12x256xf32>
    %c0_44 = arith.constant 0 : index
    %c0_45 = arith.constant 0 : index
    %86 = vector.load %arg9[%c0_44, %c0_45] : memref<1x256xf32, #tpu.memory_space<vmem>>, vector<1x256xf32>
    %87 = vector.broadcast %86 : vector<1x256xf32> to vector<12x256xf32>
    %88 = arith.addf %85, %87 : vector<12x256xf32>
    %89 = vector.shape_cast %88 : vector<12x256xf32> to vector<1x12x256xf32>
    %c0_46 = arith.constant 0 : index
    %c0_47 = arith.constant 0 : index
    %c0_48 = arith.constant 0 : index
    %90 = vector.load %arg10[%c0_46, %c0_47, %c0_48] : memref<1x12x256xf32, #tpu.memory_space<vmem>>, vector<1x12x256xf32>
    tpu.vector_store %arg10[%c0_46, %c0_47, %c0_48], %89 {strides = array<i32>} : memref<1x12x256xf32, #tpu.memory_space<vmem>>, vector<1x12x256xf32>,
    return
  }
  func.func @transform_0(%arg0: i32) -> (i32, i32, i32) {
    %c0_i32 = arith.constant 0 : i32
    %c0_i32_0 = arith.constant 0 : i32
    %c0_i32_1 = arith.constant 0 : i32
    return %arg0, %c0_i32, %c0_i32_0 : i32, i32, i32
  }
  func.func @transform_1(%arg0: i32) -> (i32, i32, i32) {
    %c0_i32 = arith.constant 0 : i32
    %c0_i32_0 = arith.constant 0 : i32
    %c0_i32_1 = arith.constant 0 : i32
    %c0_i32_2 = arith.constant 0 : i32
    return %c0_i32, %c0_i32_0, %c0_i32_1 : i32, i32, i32
  }
  func.func @transform_2(%arg0: i32) -> (i32, i32) {
    %c0_i32 = arith.constant 0 : i32
    %c0_i32_0 = arith.constant 0 : i32
    %c0_i32_1 = arith.constant 0 : i32
    return %c0_i32, %c0_i32_0 : i32, i32
  }
  func.func @transform_3(%arg0: i32) -> (i32, i32) {
    %c0_i32 = arith.constant 0 : i32
    %c0_i32_0 = arith.constant 0 : i32
    %c0_i32_1 = arith.constant 0 : i32
    return %c0_i32, %c0_i32_0 : i32, i32
  }
  func.func @transform_4(%arg0: i32) -> (i32, i32) {
    %c0_i32 = arith.constant 0 : i32
    %c0_i32_0 = arith.constant 0 : i32
    %c0_i32_1 = arith.constant 0 : i32
    return %c0_i32, %c0_i32_0 : i32, i32
  }
  func.func @transform_5(%arg0: i32) -> (i32, i32, i32) {
    %c0_i32 = arith.constant 0 : i32
    %c0_i32_0 = arith.constant 0 : i32
    %c0_i32_1 = arith.constant 0 : i32
    %c0_i32_2 = arith.constant 0 : i32
    return %c0_i32, %c0_i32_0, %c0_i32_1 : i32, i32, i32
  }
  func.func @transform_6(%arg0: i32) -> (i32, i32) {
    %c0_i32 = arith.constant 0 : i32
    %c0_i32_0 = arith.constant 0 : i32
    %c0_i32_1 = arith.constant 0 : i32
    return %c0_i32, %c0_i32_0 : i32, i32
  }
  func.func @transform_7(%arg0: i32) -> (i32, i32) {
    %c0_i32 = arith.constant 0 : i32
    %c0_i32_0 = arith.constant 0 : i32
    %c0_i32_1 = arith.constant 0 : i32
    return %c0_i32, %c0_i32_0 : i32, i32
  }
  func.func @transform_8(%arg0: i32) -> (i32, i32) {
    %c0_i32 = arith.constant 0 : i32
    %c0_i32_0 = arith.constant 0 : i32
    %c0_i32_1 = arith.constant 0 : i32
    return %c0_i32, %c0_i32_0 : i32, i32
  }
  func.func @transform_9(%arg0: i32) -> (i32, i32, i32) {
    %c0_i32 = arith.constant 0 : i32
    %c0_i32_0 = arith.constant 0 : i32
    %c0_i32_1 = arith.constant 0 : i32
    return %arg0, %c0_i32, %c0_i32_0 : i32, i32, i32
  }
}

</mosaic_0001>

<llo_original>
// kernel: _lambda_.1
$region0: #{_lambda_.1}
  #allocation0 [shape = 'u32[]', space=smem, size = 0x4, offset = 0x4, fixed_abs, tag = 'smem constant byte address 0x4 - core index']
  #allocation1 [shape = 'u32[144,128]{1,0:T(1,128)}', space=vmem, size = 0x12000, scoped, tag = 'internal scratch']
  %s0 = inlined_call_operand.vmem [shape: f32[2,16,64], index: 0, kind: input, shape index: {}]
  %s1 = inlined_call_operand.vmem [shape: bf16[3,64,512], index: 1, kind: input, shape index: {}]
  %s2 = inlined_call_operand.vmem [shape: f32[1,512], index: 2, kind: input, shape index: {}]
  %s3 = inlined_call_operand.vmem [shape: bf16[256,256], index: 3, kind: input, shape index: {}]
  %s4 = inlined_call_operand.vmem [shape: f32[1,256], index: 4, kind: input, shape index: {}]
  %s5 = inlined_call_operand.vmem [shape: bf16[3,256,256], index: 5, kind: input, shape index: {}]
  %s6 = inlined_call_operand.vmem [shape: f32[1,256], index: 6, kind: input, shape index: {}]
  %s7 = inlined_call_operand.vmem [shape: f32[1,256], index: 7, kind: input, shape index: {}]
  %s8 = inlined_call_operand.vmem [shape: f32[1,256], index: 8, kind: input, shape index: {}]
  %s9 = inlined_call_operand.vmem [shape: f32[2,12,256], index: 9, kind: output, shape index: {}]
  %s10 = sld [smem:[#allocation0]]
  $region69: #{_lambda_.1} parent=0
    _
  %s12 = ssub.s32 1, %s10
  %s13 = scalar_select 0, %s12, %s10
  loop: start=0, step=1, limit=4
  $region2: #{_lambda_.1} parent=0 // loop_pre_header
    _
  $region3: #{_lambda_.1} parent=0 // loop_header
    %s15 = sphi 0, %s19
    %p16 = scmp.ge.s32.totalorder %s15, 4
    %s25 = sphi 0, %s27
    %s28 = sphi 0, %s25
    %s29 = sphi 0, %s28
    %s45 = sphi 0, %s29
    %s49 = sphi 0, %s49
    %s51 = sphi 0, %s49
    %s52 = sphi 0, %s51
    %s66 = sphi 0, %s52
    %s70 = sphi 0, %s70
    %s72 = sphi 0, %s70
    %s73 = sphi 0, %s72
    %s87 = sphi 0, %s73
    %s91 = sphi 0, %s91
    %s93 = sphi 0, %s91
    %s94 = sphi 0, %s93
    %s108 = sphi 0, %s94
    %s112 = sphi 0, %s112
    %s114 = sphi 0, %s112
    %s115 = sphi 0, %s114
    %s129 = sphi 0, %s115
    %s133 = sphi 0, %s133
    %s135 = sphi 0, %s133
    %s136 = sphi 0, %s135
    %s150 = sphi 0, %s136
    %s154 = sphi 0, %s154
    %s156 = sphi 0, %s154
    %s157 = sphi 0, %s156
    %s171 = sphi 0, %s157
    %s175 = sphi 0, %s175
    %s177 = sphi 0, %s175
    %s178 = sphi 0, %s177
    %s192 = sphi 0, %s178
    %s196 = sphi 0, %s196
    %s198 = sphi 0, %s196
    %s199 = sphi 0, %s198
    %s213 = sphi 0, %s199
    %s219 = sphi 0, %s221
    %s222 = sphi 0, %s219
    %s223 = sphi 0, %s222
    %s239 = sphi 0, %s223
  $region4: #{_lambda_.1} parent=0 // loop_header_branch
    %18 = sbr.rel (%p16) target = $region8
  $region5: #{_lambda_.1} parent=0 // loop_body
    %s20 = ssub.s32 %s15, 1
    %s21 = ssub.s32 %s15, 2
    %s22 = sadd.s32 %s15, 1
    %s23 = ssub.s32 %s15, %s22
    %p24 = scmp.eq.s32.totalorder %s23, 0
    %s26 = sadd.s32 %s25, 1
    %s27 = scalar_select %p24, %s25, %s26
    %p30 = pneg %p24
    %p31 = scmp.eq.s32.totalorder %s15, 1
    %p32 = por %p30, %p31
    %p33 = scmp.ne.s32.totalorder %s25, %s28
    %p34 = scmp.eq.s32.totalorder %s15, 0
    %p35 = por %p33, %p34
    %p36 = scmp.ne.s32.totalorder %s25, %s28
    %p37 = scmp.eq.s32.totalorder %s20, 1
    %p38 = por %p36, %p37
    %p39 = scmp.ne.s32.totalorder %s28, %s29
    %p40 = scmp.eq.s32.totalorder %s20, 0
    %p41 = por %p39, %p40
    %p42 = scmp.ne.s32.totalorder %s28, %s29
    %p43 = scmp.eq.s32.totalorder %s21, 1
    %p44 = por %p42, %p43
    %p46 = scmp.ne.s32.totalorder %s29, %s45
    %p47 = scmp.eq.s32.totalorder %s21, 0
    %p48 = por %p46, %p47
    %s50 = sadd.s32 %s49, 1
    %p53 = scmp.eq.s32.totalorder %s15, 1
    %p54 = scmp.ne.s32.totalorder %s49, %s51
    %p55 = scmp.eq.s32.totalorder %s15, 0
    %p56 = por %p54, %p55
    %p57 = scmp.ne.s32.totalorder %s49, %s51
    %p58 = scmp.eq.s32.totalorder %s20, 1
    %p59 = por %p57, %p58
    %p60 = scmp.ne.s32.totalorder %s51, %s52
    %p61 = scmp.eq.s32.totalorder %s20, 0
    %p62 = por %p60, %p61
    %p63 = scmp.ne.s32.totalorder %s51, %s52
    %p64 = scmp.eq.s32.totalorder %s21, 1
    %p65 = por %p63, %p64
    %p67 = scmp.ne.s32.totalorder %s52, %s66
    %p68 = scmp.eq.s32.totalorder %s21, 0
    %p69 = por %p67, %p68
    %s71 = sadd.s32 %s70, 1
    %p74 = scmp.eq.s32.totalorder %s15, 1
    %p75 = scmp.ne.s32.totalorder %s70, %s72
    %p76 = scmp.eq.s32.totalorder %s15, 0
    %p77 = por %p75, %p76
    %p78 = scmp.ne.s32.totalorder %s70, %s72
    %p79 = scmp.eq.s32.totalorder %s20, 1
    %p80 = por %p78, %p79
    %p81 = scmp.ne.s32.totalorder %s72, %s73
    %p82 = scmp.eq.s32.totalorder %s20, 0
    %p83 = por %p81, %p82
    %p84 = scmp.ne.s32.totalorder %s72, %s73
    %p85 = scmp.eq.s32.totalorder %s21, 1
    %p86 = por %p84, %p85
    %p88 = scmp.ne.s32.totalorder %s73, %s87
    %p89 = scmp.eq.s32.totalorder %s21, 0
    %p90 = por %p88, %p89
    %s92 = sadd.s32 %s91, 1
    %p95 = scmp.eq.s32.totalorder %s15, 1
    %p96 = scmp.ne.s32.totalorder %s91, %s93
    %p97 = scmp.eq.s32.totalorder %s15, 0
    %p98 = por %p96, %p97
    %p99 = scmp.ne.s32.totalorder %s91, %s93
    %p100 = scmp.eq.s32.totalorder %s20, 1
    %p101 = por %p99, %p100
    %p102 = scmp.ne.s32.totalorder %s93, %s94
    %p103 = scmp.eq.s32.totalorder %s20, 0
    %p104 = por %p102, %p103
    %p105 = scmp.ne.s32.totalorder %s93, %s94
    %p106 = scmp.eq.s32.totalorder %s21, 1
    %p107 = por %p105, %p106
    %p109 = scmp.ne.s32.totalorder %s94, %s108
    %p110 = scmp.eq.s32.totalorder %s21, 0
    %p111 = por %p109, %p110
    %s113 = sadd.s32 %s112, 1
    %p116 = scmp.eq.s32.totalorder %s15, 1
    %p117 = scmp.ne.s32.totalorder %s112, %s114
    %p118 = scmp.eq.s32.totalorder %s15, 0
    %p119 = por %p117, %p118
    %p120 = scmp.ne.s32.totalorder %s112, %s114
    %p121 = scmp.eq.s32.totalorder %s20, 1
    %p122 = por %p120, %p121
    %p123 = scmp.ne.s32.totalorder %s114, %s115
    %p124 = scmp.eq.s32.totalorder %s20, 0
    %p125 = por %p123, %p124
    %p126 = scmp.ne.s32.totalorder %s114, %s115
    %p127 = scmp.eq.s32.totalorder %s21, 1
    %p128 = por %p126, %p127
    %p130 = scmp.ne.s32.totalorder %s115, %s129
    %p131 = scmp.eq.s32.totalorder %s21, 0
    %p132 = por %p130, %p131
    %s134 = sadd.s32 %s133, 1
    %p137 = scmp.eq.s32.totalorder %s15, 1
    %p138 = scmp.ne.s32.totalorder %s133, %s135
    %p139 = scmp.eq.s32.totalorder %s15, 0
    %p140 = por %p138, %p139
    %p141 = scmp.ne.s32.totalorder %s133, %s135
    %p142 = scmp.eq.s32.totalorder %s20, 1
    %p143 = por %p141, %p142
    %p144 = scmp.ne.s32.totalorder %s135, %s136
    %p145 = scmp.eq.s32.totalorder %s20, 0
    %p146 = por %p144, %p145
    %p147 = scmp.ne.s32.totalorder %s135, %s136
    %p148 = scmp.eq.s32.totalorder %s21, 1
    %p149 = por %p147, %p148
    %p151 = scmp.ne.s32.totalorder %s136, %s150
    %p152 = scmp.eq.s32.totalorder %s21, 0
    %p153 = por %p151, %p152
    %s155 = sadd.s32 %s154, 1
    %p158 = scmp.eq.s32.totalorder %s15, 1
    %p159 = scmp.ne.s32.totalorder %s154, %s156
    %p160 = scmp.eq.s32.totalorder %s15, 0
    %p161 = por %p159, %p160
    %p162 = scmp.ne.s32.totalorder %s154, %s156
    %p163 = scmp.eq.s32.totalorder %s20, 1
    %p164 = por %p162, %p163
    %p165 = scmp.ne.s32.totalorder %s156, %s157
    %p166 = scmp.eq.s32.totalorder %s20, 0
    %p167 = por %p165, %p166
    %p168 = scmp.ne.s32.totalorder %s156, %s157
    %p169 = scmp.eq.s32.totalorder %s21, 1
    %p170 = por %p168, %p169
    %p172 = scmp.ne.s32.totalorder %s157, %s171
    %p173 = scmp.eq.s32.totalorder %s21, 0
    %p174 = por %p172, %p173
    %s176 = sadd.s32 %s175, 1
    %p179 = scmp.eq.s32.totalorder %s15, 1
    %p180 = scmp.ne.s32.totalorder %s175, %s177
    %p181 = scmp.eq.s32.totalorder %s15, 0
    %p182 = por %p180, %p181
    %p183 = scmp.ne.s32.totalorder %s175, %s177
    %p184 = scmp.eq.s32.totalorder %s20, 1
    %p185 = por %p183, %p184
    %p186 = scmp.ne.s32.totalorder %s177, %s178
    %p187 = scmp.eq.s32.totalorder %s20, 0
    %p188 = por %p186, %p187
    %p189 = scmp.ne.s32.totalorder %s177, %s178
    %p190 = scmp.eq.s32.totalorder %s21, 1
    %p191 = por %p189, %p190
    %p193 = scmp.ne.s32.totalorder %s178, %s192
    %p194 = scmp.eq.s32.totalorder %s21, 0
    %p195 = por %p193, %p194
    %s197 = sadd.s32 %s196, 1
    %p200 = scmp.eq.s32.totalorder %s15, 1
    %p201 = scmp.ne.s32.totalorder %s196, %s198
    %p202 = scmp.eq.s32.totalorder %s15, 0
    %p203 = por %p201, %p202
    %p204 = scmp.ne.s32.totalorder %s196, %s198
    %p205 = scmp.eq.s32.totalorder %s20, 1
    %p206 = por %p204, %p205
    %p207 = scmp.ne.s32.totalorder %s198, %s199
    %p208 = scmp.eq.s32.totalorder %s20, 0
    %p209 = por %p207, %p208
    %p210 = scmp.ne.s32.totalorder %s198, %s199
    %p211 = scmp.eq.s32.totalorder %s21, 1
    %p212 = por %p210, %p211
    %p214 = scmp.ne.s32.totalorder %s199, %s213
    %p215 = scmp.eq.s32.totalorder %s21, 0
    %p216 = por %p214, %p215
    %s217 = ssub.s32 %s15, %s22
    %p218 = scmp.eq.s32.totalorder %s217, 0
    %s220 = sadd.s32 %s219, 1
    %s221 = scalar_select %p218, %s219, %s220
    %p224 = pneg %p218
    %p225 = scmp.eq.s32.totalorder %s15, 1
    %p226 = por %p224, %p225
    %p227 = scmp.ne.s32.totalorder %s219, %s222
    %p228 = scmp.eq.s32.totalorder %s15, 0
    %p229 = por %p227, %p228
    %p230 = scmp.ne.s32.totalorder %s219, %s222
    %p231 = scmp.eq.s32.totalorder %s20, 1
    %p232 = por %p230, %p231
    %p233 = scmp.ne.s32.totalorder %s222, %s223
    %p234 = scmp.eq.s32.totalorder %s20, 0
    %p235 = por %p233, %p234
    %p236 = scmp.ne.s32.totalorder %s222, %s223
    %p237 = scmp.eq.s32.totalorder %s21, 1
    %p238 = por %p236, %p237
    %p240 = scmp.ne.s32.totalorder %s223, %s239
    %p241 = scmp.eq.s32.totalorder %s21, 0
    %p242 = por %p240, %p241
    %p243 = scmp.le.s32.totalorder 1, %s15
    %p244 = scmp.lt.s32.totalorder %s15, 3
    %p245 = pnand %p243, %p244
    %p246 = pneg %p245
    // Predicated region
    $region9: #{_lambda_.1} parent=5 // pred_check
      _
    $region10: #{_lambda_.1} parent=5 // pred_check_branch
      %248 = sbr.rel (%p245) target = $region12
    $region11: #{_lambda_.1} parent=5 // pred_region
      %s249 = ssub.s32 %s15, 1
      // Predicated region
      $region13: #{_lambda_.1} parent=11 // pred_check
        %p250 = pneg %p62
      $region14: #{_lambda_.1} parent=11 // pred_check_branch
        %252 = sbr.rel (%p250) target = $region16
      $region15: #{_lambda_.1} parent=11 // pred_region
        _
      $region16: #{_lambda_.1} parent=11 // pred_fallthru
        _
      // Predicated region
      $region17: #{_lambda_.1} parent=11 // pred_check
        %p253 = pneg %p83
      $region18: #{_lambda_.1} parent=11 // pred_check_branch
        %255 = sbr.rel (%p253) target = $region20
      $region19: #{_lambda_.1} parent=11 // pred_region
        _
      $region20: #{_lambda_.1} parent=11 // pred_fallthru
        _
      // Predicated region
      $region21: #{_lambda_.1} parent=11 // pred_check
        %p256 = pneg %p104
      $region22: #{_lambda_.1} parent=11 // pred_check_branch
        %258 = sbr.rel (%p256) target = $region24
      $region23: #{_lambda_.1} parent=11 // pred_region
        _
      $region24: #{_lambda_.1} parent=11 // pred_fallthru
        _
      // Predicated region
      $region25: #{_lambda_.1} parent=11 // pred_check
        %p259 = pneg %p125
      $region26: #{_lambda_.1} parent=11 // pred_check_branch
        %261 = sbr.rel (%p259) target = $region28
      $region27: #{_lambda_.1} parent=11 // pred_region
        _
      $region28: #{_lambda_.1} parent=11 // pred_fallthru
        _
      // Predicated region
      $region29: #{_lambda_.1} parent=11 // pred_check
        %p262 = pneg %p146
      $region30: #{_lambda_.1} parent=11 // pred_check_branch
        %264 = sbr.rel (%p262) target = $region32
      $region31: #{_lambda_.1} parent=11 // pred_region
        _
      $region32: #{_lambda_.1} parent=11 // pred_fallthru
        _
      // Predicated region
      $region33: #{_lambda_.1} parent=11 // pred_check
        %p265 = pneg %p167
      $region34: #{_lambda_.1} parent=11 // pred_check_branch
        %267 = sbr.rel (%p265) target = $region36
      $region35: #{_lambda_.1} parent=11 // pred_region
        _
      $region36: #{_lambda_.1} parent=11 // pred_fallthru
        _
      // Predicated region
      $region37: #{_lambda_.1} parent=11 // pred_check
        %p268 = pneg %p188
      $region38: #{_lambda_.1} parent=11 // pred_check_branch
        %270 = sbr.rel (%p268) target = $region40
      $region39: #{_lambda_.1} parent=11 // pred_region
        _
      $region40: #{_lambda_.1} parent=11 // pred_fallthru
        _
      // Predicated region
      $region41: #{_lambda_.1} parent=11 // pred_check
        %p271 = pneg %p209
      $region42: #{_lambda_.1} parent=11 // pred_check_branch
        %273 = sbr.rel (%p271) target = $region44
      $region43: #{_lambda_.1} parent=11 // pred_region
        _
      $region44: #{_lambda_.1} parent=11 // pred_fallthru
        _
    $region12: #{_lambda_.1} parent=5 // pred_fallthru
      _
    %p274 = scmp.lt.s32.totalorder %s15, 2
    // Predicated region
    $region45: #{_lambda_.1} parent=5 // pred_check
      %p275 = pneg %p274
    $region46: #{_lambda_.1} parent=5 // pred_check_branch
      %277 = sbr.rel (%p275) target = $region48
    $region47: #{_lambda_.1} parent=5 // pred_region
      // Predicated region
      $region49: #{_lambda_.1} parent=47 // pred_check
        %p278 = pneg %p35
      $region50: #{_lambda_.1} parent=47 // pred_check_branch
        %280 = sbr.rel (%p278) target = $region52
      $region51: #{_lambda_.1} parent=47 // pred_region
        %p281 = scmp.lt.s32.totalorder %s15, 1
        %s282 = scalar_select %p281, %s15, 1
        %s283 = smul.addr %s282, 2
        %s284 = smul.addr %s283, 8
        %s285 = scalar_lea.vmem %s0, %s284
      $region52: #{_lambda_.1} parent=47 // pred_fallthru
        _
    $region48: #{_lambda_.1} parent=5 // pred_fallthru
      _
    %p286 = scmp.le.s32.totalorder 1, %s15
    %p287 = scmp.lt.s32.totalorder %s15, 3
    %p288 = pnand %p286, %p287
    %p289 = pneg %p288
    // Predicated region
    $region53: #{_lambda_.1} parent=5 // pred_check
      _
    $region54: #{_lambda_.1} parent=5 // pred_check_branch
      %291 = sbr.rel (%p288) target = $region56
    $region55: #{_lambda_.1} parent=5 // pred_region
      %s292 = ssub.s32 %s15, 1
      %p293 = scmp.lt.s32.totalorder %s20, 1
      %s294 = scalar_select %p293, %s20, 1
      %s295 = smul.addr %s294, 2
      %s296 = smul.addr %s295, 8
      %s297 = scalar_lea.vmem %s0, %s296
      %p298 = pneg %p41
      %p299 = pneg %p38
      %p300 = pneg %p62
      %p301 = pneg %p59
      %p302 = pneg %p83
      %p303 = pneg %p80
      %p304 = pneg %p104
      %p305 = pneg %p101
      %p306 = pneg %p125
      %p307 = pneg %p122
      %p308 = pneg %p146
      %p309 = pneg %p143
      %p310 = pneg %p167
      %p311 = pneg %p164
      %p312 = pneg %p188
      %p313 = pneg %p185
      %p314 = pneg %p209
      %p315 = pneg %p206
      %p316 = pneg %p235
      %p317 = pneg %p232
      %p318 = scmp.lt.s32.totalorder %s20, 1
      %s319 = scalar_select %p318, %s20, 1
      %s320 = smul.addr %s319, 4
      %s321 = smul.addr %s320, 8
      %s322 = scalar_lea.vmem %s9, %s321
      %p323 = scmp.lt.s32.totalorder %s20, 1
      %s324 = scalar_select %p323, %s20, 1
      %s325 = smul.addr %s324, 2
      %s326 = smul.addr %s325, 8
      %s327 = scalar_lea.vmem %s0, %s326
      %p328 = scmp.lt.s32.totalorder %s20, 1
      %s329 = scalar_select %p328, %s20, 1
      %s330 = smul.addr %s329, 4
      %s331 = smul.addr %s330, 8
      %s332 = scalar_lea.vmem %s9, %s331
      %v334 = vld [vmem:[%s327] sm:$0xff]
      %v335 = vld [vmem:[%s327 + $0x8] sm:$0xff]
      %v336 = vpack.c.bf16 %v335, %v334
      %v337 = vld [vmem:[%s1] sm:$0xff]
      %v338 = vld [vmem:[%s1 + $0x8] sm:$0xff]
      %v339 = vld [vmem:[%s1 + $0x10] sm:$0xff]
      %v340 = vld [vmem:[%s1 + $0x18] sm:$0xff]
      %v341 = vld [vmem:[%s1 + $0x20] sm:$0xff]
      %v342 = vld [vmem:[%s1 + $0x28] sm:$0xff]
      %v343 = vld [vmem:[%s1 + $0x30] sm:$0xff]
      %v344 = vld [vmem:[%s1 + $0x38] sm:$0xff]
      %v345 = vld [vmem:[%s1 + $0x40] sm:$0xff]
      %v346 = vld [vmem:[%s1 + $0x48] sm:$0xff]
      %v347 = vld [vmem:[%s1 + $0x50] sm:$0xff]
      %v348 = vld [vmem:[%s1 + $0x58] sm:$0xff]
      %v349 = vld [vmem:[%s1 + $0x60] sm:$0xff]
      %v350 = vld [vmem:[%s1 + $0x68] sm:$0xff]
      %v351 = vld [vmem:[%s1 + $0x70] sm:$0xff]
      %v352 = vld [vmem:[%s1 + $0x78] sm:$0xff]
      %s353 = scalar_lea.vmem %s1, 128
      %v354 = vld [vmem:[%s353] sm:$0xff]
      %v355 = vld [vmem:[%s353 + $0x8] sm:$0xff]
      %v356 = vld [vmem:[%s353 + $0x10] sm:$0xff]
      %v357 = vld [vmem:[%s353 + $0x18] sm:$0xff]
      %v358 = vld [vmem:[%s353 + $0x20] sm:$0xff]
      %v359 = vld [vmem:[%s353 + $0x28] sm:$0xff]
      %v360 = vld [vmem:[%s353 + $0x30] sm:$0xff]
      %v361 = vld [vmem:[%s353 + $0x38] sm:$0xff]
      %v362 = vld [vmem:[%s353 + $0x40] sm:$0xff]
      %v363 = vld [vmem:[%s353 + $0x48] sm:$0xff]
      %v364 = vld [vmem:[%s353 + $0x50] sm:$0xff]
      %v365 = vld [vmem:[%s353 + $0x58] sm:$0xff]
      %v366 = vld [vmem:[%s353 + $0x60] sm:$0xff]
      %v367 = vld [vmem:[%s353 + $0x68] sm:$0xff]
      %v368 = vld [vmem:[%s353 + $0x70] sm:$0xff]
      %v369 = vld [vmem:[%s353 + $0x78] sm:$0xff]
      %v371 = vshrl.u32 %v336, 16
      %v373 = vshll.u32 %v336, 16
      %v375 = vrot.slane %v373, 1
      %v376 = vor.u32 %v371, %v375
      %v393 = vunpack.c.l.b16 %v354
      %v394 = vunpack.c.h.b16 %v354
      %v395 = vunpack.c.l.b16 %v355
      %v396 = vunpack.c.h.b16 %v355
      %v397 = vunpack.c.l.b16 %v356
      %v398 = vunpack.c.h.b16 %v356
      %v399 = vunpack.c.l.b16 %v357
      %v400 = vunpack.c.h.b16 %v357
      %v401 = vunpack.c.l.b16 %v358
      %v402 = vunpack.c.h.b16 %v358
      %v403 = vunpack.c.l.b16 %v359
      %v404 = vunpack.c.h.b16 %v359
      %v405 = vunpack.c.l.b16 %v360
      %v406 = vunpack.c.h.b16 %v360
      %v407 = vunpack.c.l.b16 %v361
      %v408 = vunpack.c.h.b16 %v361
      %v409 = vunpack.c.l.b16 %v362
      %v410 = vunpack.c.h.b16 %v362
      %v411 = vunpack.c.l.b16 %v363
      %v412 = vunpack.c.h.b16 %v363
      %v413 = vunpack.c.l.b16 %v364
      %v414 = vunpack.c.h.b16 %v364
      %v415 = vunpack.c.l.b16 %v365
      %v416 = vunpack.c.h.b16 %v365
      %v417 = vunpack.c.l.b16 %v366
      %v418 = vunpack.c.h.b16 %v366
      %v419 = vunpack.c.l.b16 %v367
      %v420 = vunpack.c.h.b16 %v367
      %v421 = vunpack.c.l.b16 %v368
      %v422 = vunpack.c.h.b16 %v368
      %v423 = vunpack.c.l.b16 %v369
      %v424 = vunpack.c.h.b16 %v369
      %v425 = vpack.c.b16 %v397, %v393
      %v426 = vpack.c.b16 %v398, %v394
      %v427 = vpack.c.b16 %v399, %v395
      %v428 = vpack.c.b16 %v400, %v396
      %v429 = vpack.c.b16 %v405, %v401
      %v430 = vpack.c.b16 %v406, %v402
      %v431 = vpack.c.b16 %v407, %v403
      %v432 = vpack.c.b16 %v408, %v404
      %v433 = vpack.c.b16 %v413, %v409
      %v434 = vpack.c.b16 %v414, %v410
      %v435 = vpack.c.b16 %v415, %v411
      %v436 = vpack.c.b16 %v416, %v412
      %v437 = vpack.c.b16 %v421, %v417
      %v438 = vpack.c.b16 %v422, %v418
      %v439 = vpack.c.b16 %v423, %v419
      %v440 = vpack.c.b16 %v424, %v420
      %vm457 = vcmask 523264
      %v459 = vsel %vm457, %v376, 0
      %461 = vmatprep.subr.bf16.mxu0 0
      %462 = vmatpush1.bf16.msra.mxu0 0
      %463 = vmatprep.subr.bf16.mxu0 0
      %464 = vmatpush1.bf16.msra.mxu0 0
      %465 = vmatprep.subr.bf16.mxu0 0
      %466 = vmatpush1.bf16.msra.mxu0 0
      %467 = vmatprep.subr.bf16.mxu0 0
      %468 = vmatpush1.bf16.msra.mxu0 0
      %469 = vmatprep.subr.bf16.mxu0 %v438
      %470 = vmatpush1.bf16.msra.mxu0 %v437
      %471 = vmatprep.subr.bf16.mxu0 %v434
      %472 = vmatpush1.bf16.msra.mxu0 %v433
      %473 = vmatprep.subr.bf16.mxu0 %v430
      %474 = vmatpush1.bf16.msra.mxu0 %v429
      %475 = vmatprep.subr.bf16.mxu0 %v426
      %476 = vmatpush1.bf16.msra.mxu0 %v425
      %477 = vmatprep.subr.bf16.mxu0 0
      %478 = vmatpush2.bf16.msra.mxu0 0
      %479 = vmatprep.subr.bf16.mxu0 0
      %480 = vmatpush2.bf16.msra.mxu0 0
      %481 = vmatprep.subr.bf16.mxu0 0
      %482 = vmatpush2.bf16.msra.mxu0 0
      %483 = vmatprep.subr.bf16.mxu0 0
      %484 = vmatpush2.bf16.msra.mxu0 0
      %485 = vmatprep.subr.bf16.mxu0 0
      %486 = vmatpush2.bf16.msra.mxu0 0
      %487 = vmatprep.subr.bf16.mxu0 0
      %488 = vmatpush2.bf16.msra.mxu0 0
      %489 = vmatprep.subr.bf16.mxu0 0
      %490 = vmatpush2.bf16.msra.mxu0 0
      %491 = vmatprep.subr.bf16.mxu0 0
      %492 = vmatpush2.bf16.msra.mxu0 0
      %493 = vmatprep.mubr.bf16.mxu0 0
      %494 = vmatmul.mubr.bf16.gmra.mxu0 %v459
      %v495 = vpop.f32.mrf.mxu0
      %v496 = vadd.f32 0.0, %v495
      %v497 = vpop.f32.mrf.mxu0
      %v498 = vadd.f32 0.0, %v497
      %v499 = vpop.f32.mrf.mxu0
      %v500 = vadd.f32 0.0, %v499
      %v501 = vpop.f32.mrf.mxu0
      %v502 = vadd.f32 0.0, %v501
      %503 = vdwg.mxu0
      %504 = vmatprep.subr.bf16.mxu0 0
      %505 = vmatpush1.bf16.msra.mxu0 0
      %506 = vmatprep.subr.bf16.mxu0 0
      %507 = vmatpush1.bf16.msra.mxu0 0
      %508 = vmatprep.subr.bf16.mxu0 0
      %509 = vmatpush1.bf16.msra.mxu0 0
      %510 = vmatprep.subr.bf16.mxu0 0
      %511 = vmatpush1.bf16.msra.mxu0 0
      %512 = vmatprep.subr.bf16.mxu0 %v440
      %513 = vmatpush1.bf16.msra.mxu0 %v439
      %514 = vmatprep.subr.bf16.mxu0 %v436
      %515 = vmatpush1.bf16.msra.mxu0 %v435
      %516 = vmatprep.subr.bf16.mxu0 %v432
      %517 = vmatpush1.bf16.msra.mxu0 %v431
      %518 = vmatprep.subr.bf16.mxu0 %v428
      %519 = vmatpush1.bf16.msra.mxu0 %v427
      %520 = vmatprep.subr.bf16.mxu0 0
      %521 = vmatpush2.bf16.msra.mxu0 0
      %522 = vmatprep.subr.bf16.mxu0 0
      %523 = vmatpush2.bf16.msra.mxu0 0
      %524 = vmatprep.subr.bf16.mxu0 0
      %525 = vmatpush2.bf16.msra.mxu0 0
      %526 = vmatprep.subr.bf16.mxu0 0
      %527 = vmatpush2.bf16.msra.mxu0 0
      %528 = vmatprep.subr.bf16.mxu0 0
      %529 = vmatpush2.bf16.msra.mxu0 0
      %530 = vmatprep.subr.bf16.mxu0 0
      %531 = vmatpush2.bf16.msra.mxu0 0
      %532 = vmatprep.subr.bf16.mxu0 0
      %533 = vmatpush2.bf16.msra.mxu0 0
      %534 = vmatprep.subr.bf16.mxu0 0
      %535 = vmatpush2.bf16.msra.mxu0 0
      %536 = vmatprep.mubr.bf16.mxu0 0
      %537 = vmatmul.mubr.bf16.gmra.mxu0 %v459
      %v538 = vpop.f32.mrf.mxu0
      %v539 = vadd.f32 0.0, %v538
      %v540 = vpop.f32.mrf.mxu0
      %v541 = vadd.f32 0.0, %v540
      %v542 = vpop.f32.mrf.mxu0
      %v543 = vadd.f32 0.0, %v542
      %v544 = vpop.f32.mrf.mxu0
      %v545 = vadd.f32 0.0, %v544
      %546 = vdwg.mxu0
      %v563 = vunpack.c.l.b16 %v337
      %v564 = vunpack.c.h.b16 %v337
      %v565 = vunpack.c.l.b16 %v338
      %v566 = vunpack.c.h.b16 %v338
      %v567 = vunpack.c.l.b16 %v339
      %v568 = vunpack.c.h.b16 %v339
      %v569 = vunpack.c.l.b16 %v340
      %v570 = vunpack.c.h.b16 %v340
      %v571 = vunpack.c.l.b16 %v341
      %v572 = vunpack.c.h.b16 %v341
      %v573 = vunpack.c.l.b16 %v342
      %v574 = vunpack.c.h.b16 %v342
      %v575 = vunpack.c.l.b16 %v343
      %v576 = vunpack.c.h.b16 %v343
      %v577 = vunpack.c.l.b16 %v344
      %v578 = vunpack.c.h.b16 %v344
      %v579 = vunpack.c.l.b16 %v345
      %v580 = vunpack.c.h.b16 %v345
      %v581 = vunpack.c.l.b16 %v346
      %v582 = vunpack.c.h.b16 %v346
      %v583 = vunpack.c.l.b16 %v347
      %v584 = vunpack.c.h.b16 %v347
      %v585 = vunpack.c.l.b16 %v348
      %v586 = vunpack.c.h.b16 %v348
      %v587 = vunpack.c.l.b16 %v349
      %v588 = vunpack.c.h.b16 %v349
      %v589 = vunpack.c.l.b16 %v350
      %v590 = vunpack.c.h.b16 %v350
      %v591 = vunpack.c.l.b16 %v351
      %v592 = vunpack.c.h.b16 %v351
      %v593 = vunpack.c.l.b16 %v352
      %v594 = vunpack.c.h.b16 %v352
      %v595 = vpack.c.b16 %v567, %v563
      %v596 = vpack.c.b16 %v568, %v564
      %v597 = vpack.c.b16 %v569, %v565
      %v598 = vpack.c.b16 %v570, %v566
      %v599 = vpack.c.b16 %v575, %v571
      %v600 = vpack.c.b16 %v576, %v572
      %v601 = vpack.c.b16 %v577, %v573
      %v602 = vpack.c.b16 %v578, %v574
      %v603 = vpack.c.b16 %v583, %v579
      %v604 = vpack.c.b16 %v584, %v580
      %v605 = vpack.c.b16 %v585, %v581
      %v606 = vpack.c.b16 %v586, %v582
      %v607 = vpack.c.b16 %v591, %v587
      %v608 = vpack.c.b16 %v592, %v588
      %v609 = vpack.c.b16 %v593, %v589
      %v610 = vpack.c.b16 %v594, %v590
      %v627 = vsel %vm457, %v336, 0
      %629 = vmatprep.subr.bf16.mxu0 0
      %630 = vmatpush1.bf16.msra.mxu0 0
      %631 = vmatprep.subr.bf16.mxu0 0
      %632 = vmatpush1.bf16.msra.mxu0 0
      %633 = vmatprep.subr.bf16.mxu0 0
      %634 = vmatpush1.bf16.msra.mxu0 0
      %635 = vmatprep.subr.bf16.mxu0 0
      %636 = vmatpush1.bf16.msra.mxu0 0
      %637 = vmatprep.subr.bf16.mxu0 %v608
      %638 = vmatpush1.bf16.msra.mxu0 %v607
      %639 = vmatprep.subr.bf16.mxu0 %v604
      %640 = vmatpush1.bf16.msra.mxu0 %v603
      %641 = vmatprep.subr.bf16.mxu0 %v600
      %642 = vmatpush1.bf16.msra.mxu0 %v599
      %643 = vmatprep.subr.bf16.mxu0 %v596
      %644 = vmatpush1.bf16.msra.mxu0 %v595
      %645 = vmatprep.subr.bf16.mxu0 0
      %646 = vmatpush2.bf16.msra.mxu0 0
      %647 = vmatprep.subr.bf16.mxu0 0
      %648 = vmatpush2.bf16.msra.mxu0 0
      %649 = vmatprep.subr.bf16.mxu0 0
      %650 = vmatpush2.bf16.msra.mxu0 0
      %651 = vmatprep.subr.bf16.mxu0 0
      %652 = vmatpush2.bf16.msra.mxu0 0
      %653 = vmatprep.subr.bf16.mxu0 0
      %654 = vmatpush2.bf16.msra.mxu0 0
      %655 = vmatprep.subr.bf16.mxu0 0
      %656 = vmatpush2.bf16.msra.mxu0 0
      %657 = vmatprep.subr.bf16.mxu0 0
      %658 = vmatpush2.bf16.msra.mxu0 0
      %659 = vmatprep.subr.bf16.mxu0 0
      %660 = vmatpush2.bf16.msra.mxu0 0
      %661 = vmatprep.mubr.bf16.mxu0 0
      %662 = vmatmul.mubr.bf16.gmra.mxu0 %v627
      %v663 = vpop.f32.mrf.mxu0
      %v664 = vadd.f32 %v496, %v663
      %v665 = vpop.f32.mrf.mxu0
      %v666 = vadd.f32 %v498, %v665
      %v667 = vpop.f32.mrf.mxu0
      %v668 = vadd.f32 %v500, %v667
      %v669 = vpop.f32.mrf.mxu0
      %v670 = vadd.f32 %v502, %v669
      %671 = vdwg.mxu0
      %672 = vmatprep.subr.bf16.mxu0 0
      %673 = vmatpush1.bf16.msra.mxu0 0
      %674 = vmatprep.subr.bf16.mxu0 0
      %675 = vmatpush1.bf16.msra.mxu0 0
      %676 = vmatprep.subr.bf16.mxu0 0
      %677 = vmatpush1.bf16.msra.mxu0 0
      %678 = vmatprep.subr.bf16.mxu0 0
      %679 = vmatpush1.bf16.msra.mxu0 0
      %680 = vmatprep.subr.bf16.mxu0 %v610
      %681 = vmatpush1.bf16.msra.mxu0 %v609
      %682 = vmatprep.subr.bf16.mxu0 %v606
      %683 = vmatpush1.bf16.msra.mxu0 %v605
      %684 = vmatprep.subr.bf16.mxu0 %v602
      %685 = vmatpush1.bf16.msra.mxu0 %v601
      %686 = vmatprep.subr.bf16.mxu0 %v598
      %687 = vmatpush1.bf16.msra.mxu0 %v597
      %688 = vmatprep.subr.bf16.mxu0 0
      %689 = vmatpush2.bf16.msra.mxu0 0
      %690 = vmatprep.subr.bf16.mxu0 0
      %691 = vmatpush2.bf16.msra.mxu0 0
      %692 = vmatprep.subr.bf16.mxu0 0
      %693 = vmatpush2.bf16.msra.mxu0 0
      %694 = vmatprep.subr.bf16.mxu0 0
      %695 = vmatpush2.bf16.msra.mxu0 0
      %696 = vmatprep.subr.bf16.mxu0 0
      %697 = vmatpush2.bf16.msra.mxu0 0
      %698 = vmatprep.subr.bf16.mxu0 0
      %699 = vmatpush2.bf16.msra.mxu0 0
      %700 = vmatprep.subr.bf16.mxu0 0
      %701 = vmatpush2.bf16.msra.mxu0 0
      %702 = vmatprep.subr.bf16.mxu0 0
      %703 = vmatpush2.bf16.msra.mxu0 0
      %704 = vmatprep.mubr.bf16.mxu0 0
      %705 = vmatmul.mubr.bf16.gmra.mxu0 %v627
      %v706 = vpop.f32.mrf.mxu0
      %v707 = vadd.f32 %v539, %v706
      %v708 = vpop.f32.mrf.mxu0
      %v709 = vadd.f32 %v541, %v708
      %v710 = vpop.f32.mrf.mxu0
      %v711 = vadd.f32 %v543, %v710
      %v712 = vpop.f32.mrf.mxu0
      %v713 = vadd.f32 %v545, %v712
      %714 = vdwg.mxu0
      %s715 = scalar_lea.vmem %s1, 256
      %v716 = vld [vmem:[%s715] sm:$0xff]
      %v717 = vld [vmem:[%s715 + $0x8] sm:$0xff]
      %v718 = vld [vmem:[%s715 + $0x10] sm:$0xff]
      %v719 = vld [vmem:[%s715 + $0x18] sm:$0xff]
      %v720 = vld [vmem:[%s715 + $0x20] sm:$0xff]
      %v721 = vld [vmem:[%s715 + $0x28] sm:$0xff]
      %v722 = vld [vmem:[%s715 + $0x30] sm:$0xff]
      %v723 = vld [vmem:[%s715 + $0x38] sm:$0xff]
      %v724 = vld [vmem:[%s715 + $0x40] sm:$0xff]
      %v725 = vld [vmem:[%s715 + $0x48] sm:$0xff]
      %v726 = vld [vmem:[%s715 + $0x50] sm:$0xff]
      %v727 = vld [vmem:[%s715 + $0x58] sm:$0xff]
      %v728 = vld [vmem:[%s715 + $0x60] sm:$0xff]
      %v729 = vld [vmem:[%s715 + $0x68] sm:$0xff]
      %v730 = vld [vmem:[%s715 + $0x70] sm:$0xff]
      %v731 = vld [vmem:[%s715 + $0x78] sm:$0xff]
      %v733 = vrot.slane %v336, 1
      %v750 = vunpack.c.l.b16 %v716
      %v751 = vunpack.c.h.b16 %v716
      %v752 = vunpack.c.l.b16 %v717
      %v753 = vunpack.c.h.b16 %v717
      %v754 = vunpack.c.l.b16 %v718
      %v755 = vunpack.c.h.b16 %v718
      %v756 = vunpack.c.l.b16 %v719
      %v757 = vunpack.c.h.b16 %v719
      %v758 = vunpack.c.l.b16 %v720
      %v759 = vunpack.c.h.b16 %v720
      %v760 = vunpack.c.l.b16 %v721
      %v761 = vunpack.c.h.b16 %v721
      %v762 = vunpack.c.l.b16 %v722
      %v763 = vunpack.c.h.b16 %v722
      %v764 = vunpack.c.l.b16 %v723
      %v765 = vunpack.c.h.b16 %v723
      %v766 = vunpack.c.l.b16 %v724
      %v767 = vunpack.c.h.b16 %v724
      %v768 = vunpack.c.l.b16 %v725
      %v769 = vunpack.c.h.b16 %v725
      %v770 = vunpack.c.l.b16 %v726
      %v771 = vunpack.c.h.b16 %v726
      %v772 = vunpack.c.l.b16 %v727
      %v773 = vunpack.c.h.b16 %v727
      %v774 = vunpack.c.l.b16 %v728
      %v775 = vunpack.c.h.b16 %v728
      %v776 = vunpack.c.l.b16 %v729
      %v777 = vunpack.c.h.b16 %v729
      %v778 = vunpack.c.l.b16 %v730
      %v779 = vunpack.c.h.b16 %v730
      %v780 = vunpack.c.l.b16 %v731
      %v781 = vunpack.c.h.b16 %v731
      %v782 = vpack.c.b16 %v754, %v750
      %v783 = vpack.c.b16 %v755, %v751
      %v784 = vpack.c.b16 %v756, %v752
      %v785 = vpack.c.b16 %v757, %v753
      %v786 = vpack.c.b16 %v762, %v758
      %v787 = vpack.c.b16 %v763, %v759
      %v788 = vpack.c.b16 %v764, %v760
      %v789 = vpack.c.b16 %v765, %v761
      %v790 = vpack.c.b16 %v770, %v766
      %v791 = vpack.c.b16 %v771, %v767
      %v792 = vpack.c.b16 %v772, %v768
      %v793 = vpack.c.b16 %v773, %v769
      %v794 = vpack.c.b16 %v778, %v774
      %v795 = vpack.c.b16 %v779, %v775
      %v796 = vpack.c.b16 %v780, %v776
      %v797 = vpack.c.b16 %v781, %v777
      %v815 = vsel %vm457, %v733, 0
      %817 = vmatprep.subr.bf16.mxu0 0
      %818 = vmatpush1.bf16.msra.mxu0 0
      %819 = vmatprep.subr.bf16.mxu0 0
      %820 = vmatpush1.bf16.msra.mxu0 0
      %821 = vmatprep.subr.bf16.mxu0 0
      %822 = vmatpush1.bf16.msra.mxu0 0
      %823 = vmatprep.subr.bf16.mxu0 0
      %824 = vmatpush1.bf16.msra.mxu0 0
      %825 = vmatprep.subr.bf16.mxu0 %v795
      %826 = vmatpush1.bf16.msra.mxu0 %v794
      %827 = vmatprep.subr.bf16.mxu0 %v791
      %828 = vmatpush1.bf16.msra.mxu0 %v790
      %829 = vmatprep.subr.bf16.mxu0 %v787
      %830 = vmatpush1.bf16.msra.mxu0 %v786
      %831 = vmatprep.subr.bf16.mxu0 %v783
      %832 = vmatpush1.bf16.msra.mxu0 %v782
      %833 = vmatprep.subr.bf16.mxu0 0
      %834 = vmatpush2.bf16.msra.mxu0 0
      %835 = vmatprep.subr.bf16.mxu0 0
      %836 = vmatpush2.bf16.msra.mxu0 0
      %837 = vmatprep.subr.bf16.mxu0 0
      %838 = vmatpush2.bf16.msra.mxu0 0
      %839 = vmatprep.subr.bf16.mxu0 0
      %840 = vmatpush2.bf16.msra.mxu0 0
      %841 = vmatprep.subr.bf16.mxu0 0
      %842 = vmatpush2.bf16.msra.mxu0 0
      %843 = vmatprep.subr.bf16.mxu0 0
      %844 = vmatpush2.bf16.msra.mxu0 0
      %845 = vmatprep.subr.bf16.mxu0 0
      %846 = vmatpush2.bf16.msra.mxu0 0
      %847 = vmatprep.subr.bf16.mxu0 0
      %848 = vmatpush2.bf16.msra.mxu0 0
      %849 = vmatprep.mubr.bf16.mxu0 0
      %850 = vmatmul.mubr.bf16.gmra.mxu0 %v815
      %v851 = vpop.f32.mrf.mxu0
      %v852 = vadd.f32 0.0, %v851
      %v853 = vpop.f32.mrf.mxu0
      %v854 = vadd.f32 0.0, %v853
      %v855 = vpop.f32.mrf.mxu0
      %v856 = vadd.f32 0.0, %v855
      %v857 = vpop.f32.mrf.mxu0
      %v858 = vadd.f32 0.0, %v857
      %859 = vdwg.mxu0
      %860 = vmatprep.subr.bf16.mxu0 0
      %861 = vmatpush1.bf16.msra.mxu0 0
      %862 = vmatprep.subr.bf16.mxu0 0
      %863 = vmatpush1.bf16.msra.mxu0 0
      %864 = vmatprep.subr.bf16.mxu0 0
      %865 = vmatpush1.bf16.msra.mxu0 0
      %866 = vmatprep.subr.bf16.mxu0 0
      %867 = vmatpush1.bf16.msra.mxu0 0
      %868 = vmatprep.subr.bf16.mxu0 %v797
      %869 = vmatpush1.bf16.msra.mxu0 %v796
      %870 = vmatprep.subr.bf16.mxu0 %v793
      %871 = vmatpush1.bf16.msra.mxu0 %v792
      %872 = vmatprep.subr.bf16.mxu0 %v789
      %873 = vmatpush1.bf16.msra.mxu0 %v788
      %874 = vmatprep.subr.bf16.mxu0 %v785
      %875 = vmatpush1.bf16.msra.mxu0 %v784
      %876 = vmatprep.subr.bf16.mxu0 0
      %877 = vmatpush2.bf16.msra.mxu0 0
      %878 = vmatprep.subr.bf16.mxu0 0
      %879 = vmatpush2.bf16.msra.mxu0 0
      %880 = vmatprep.subr.bf16.mxu0 0
      %881 = vmatpush2.bf16.msra.mxu0 0
      %882 = vmatprep.subr.bf16.mxu0 0
      %883 = vmatpush2.bf16.msra.mxu0 0
      %884 = vmatprep.subr.bf16.mxu0 0
      %885 = vmatpush2.bf16.msra.mxu0 0
      %886 = vmatprep.subr.bf16.mxu0 0
      %887 = vmatpush2.bf16.msra.mxu0 0
      %888 = vmatprep.subr.bf16.mxu0 0
      %889 = vmatpush2.bf16.msra.mxu0 0
      %890 = vmatprep.subr.bf16.mxu0 0
      %891 = vmatpush2.bf16.msra.mxu0 0
      %892 = vmatprep.mubr.bf16.mxu0 0
      %893 = vmatmul.mubr.bf16.gmra.mxu0 %v815
      %v894 = vpop.f32.mrf.mxu0
      %v895 = vadd.f32 0.0, %v894
      %v896 = vpop.f32.mrf.mxu0
      %v897 = vadd.f32 0.0, %v896
      %v898 = vpop.f32.mrf.mxu0
      %v899 = vadd.f32 0.0, %v898
      %v900 = vpop.f32.mrf.mxu0
      %v901 = vadd.f32 0.0, %v900
      %902 = vdwg.mxu0
      %v903 = vadd.f32 %v664, %v852
      %v904 = vadd.f32 %v666, %v854
      %v905 = vadd.f32 %v707, %v895
      %v906 = vadd.f32 %v709, %v897
      %v907 = vadd.f32 %v668, %v856
      %v908 = vadd.f32 %v670, %v858
      %v909 = vadd.f32 %v711, %v899
      %v910 = vadd.f32 %v713, %v901
      %v911 = vld [vmem:[%s2] sm:$0xf]
      %v913 = vlaneseq
      %v914 = vshrl.u32 %v913, 7
      %v915 = vsub.s32 0, %v914
      %v916 = vrot.slane %v911, %v915
      %v917 = vlaneseq
      %v918 = vshrl.u32 %v917, 7
      %v919 = vsub.s32 1, %v918
      %v920 = vrot.slane %v911, %v919
      %v921 = vlaneseq
      %v922 = vshrl.u32 %v921, 7
      %v923 = vsub.s32 2, %v922
      %v924 = vrot.slane %v911, %v923
      %v925 = vlaneseq
      %v926 = vshrl.u32 %v925, 7
      %v927 = vsub.s32 3, %v926
      %v928 = vrot.slane %v911, %v927
      %v933 = vadd.f32 %v903, %v916
      %v934 = vadd.f32 %v904, %v920
      %v935 = vadd.f32 %v905, %v924
      %v936 = vadd.f32 %v906, %v928
      %v937 = vadd.f32 %v907, %v916
      %v938 = vadd.f32 %v908, %v920
      %v939 = vadd.f32 %v909, %v924
      %v940 = vadd.f32 %v910, %v928
      %v941 = vxor.u32 %v935, 2147483648
      %v942 = vxor.u32 %v936, 2147483648
      %v943 = vxor.u32 %v939, 2147483648
      %v944 = vxor.u32 %v940, 2147483648
      %v945 = vmul.f32 %v941, 1.442695
      %v946 = vpow.pop %v945
      %v947 = vmul.f32 %v942, 1.442695
      %v948 = vpow.pop %v947
      %v949 = vmul.f32 %v943, 1.442695
      %v950 = vpow.pop %v949
      %v951 = vmul.f32 %v944, 1.442695
      %v952 = vpow.pop %v951
      %v953 = vadd.f32 %v946, 1.0
      %v954 = vadd.f32 %v948, 1.0
      %v955 = vadd.f32 %v950, 1.0
      %v956 = vadd.f32 %v952, 1.0
      %v957 = vrcp.pop %v953
      %v958 = vmul.f32 1.0, %v957
      %v959 = vrcp.pop %v954
      %v960 = vmul.f32 1.0, %v959
      %v961 = vrcp.pop %v955
      %v962 = vmul.f32 1.0, %v961
      %v963 = vrcp.pop %v956
      %v964 = vmul.f32 1.0, %v963
      %v965 = vmul.f32 %v933, %v958
      %v966 = vmul.f32 %v934, %v960
      %v967 = vmul.f32 %v937, %v962
      %v968 = vmul.f32 %v938, %v964
      %v969 = vpack.c.bf16 %v967, %v965
      %v970 = vpack.c.bf16 %v968, %v966
      %v971 = vld [vmem:[%s3] sm:$0xff]
      %v972 = vld [vmem:[%s3 + $0x8] sm:$0xff]
      %v973 = vld [vmem:[%s3 + $0x10] sm:$0xff]
      %v974 = vld [vmem:[%s3 + $0x18] sm:$0xff]
      %v975 = vld [vmem:[%s3 + $0x20] sm:$0xff]
      %v976 = vld [vmem:[%s3 + $0x28] sm:$0xff]
      %v977 = vld [vmem:[%s3 + $0x30] sm:$0xff]
      %v978 = vld [vmem:[%s3 + $0x38] sm:$0xff]
      %v979 = vld [vmem:[%s3 + $0x40] sm:$0xff]
      %v980 = vld [vmem:[%s3 + $0x48] sm:$0xff]
      %v981 = vld [vmem:[%s3 + $0x50] sm:$0xff]
      %v982 = vld [vmem:[%s3 + $0x58] sm:$0xff]
      %v983 = vld [vmem:[%s3 + $0x60] sm:$0xff]
      %v984 = vld [vmem:[%s3 + $0x68] sm:$0xff]
      %v985 = vld [vmem:[%s3 + $0x70] sm:$0xff]
      %v986 = vld [vmem:[%s3 + $0x78] sm:$0xff]
      %v987 = vld [vmem:[%s3 + $0x80] sm:$0xff]
      %v988 = vld [vmem:[%s3 + $0x88] sm:$0xff]
      %v989 = vld [vmem:[%s3 + $0x90] sm:$0xff]
      %v990 = vld [vmem:[%s3 + $0x98] sm:$0xff]
      %v991 = vld [vmem:[%s3 + $0xa0] sm:$0xff]
      %v992 = vld [vmem:[%s3 + $0xa8] sm:$0xff]
      %v993 = vld [vmem:[%s3 + $0xb0] sm:$0xff]
      %v994 = vld [vmem:[%s3 + $0xb8] sm:$0xff]
      %v995 = vld [vmem:[%s3 + $0xc0] sm:$0xff]
      %v996 = vld [vmem:[%s3 + $0xc8] sm:$0xff]
      %v997 = vld [vmem:[%s3 + $0xd0] sm:$0xff]
      %v998 = vld [vmem:[%s3 + $0xd8] sm:$0xff]
      %v999 = vld [vmem:[%s3 + $0xe0] sm:$0xff]
      %v1000 = vld [vmem:[%s3 + $0xe8] sm:$0xff]
      %v1001 = vld [vmem:[%s3 + $0xf0] sm:$0xff]
      %v1002 = vld [vmem:[%s3 + $0xf8] sm:$0xff]
      %v1003 = vld [vmem:[%s4] sm:$0x3]
      %v1005 = vlaneseq
      %v1006 = vshrl.u32 %v1005, 7
      %v1007 = vsub.s32 0, %v1006
      %v1008 = vrot.slane %v1003, %v1007
      %v1009 = vlaneseq
      %v1010 = vshrl.u32 %v1009, 7
      %v1011 = vsub.s32 1, %v1010
      %v1012 = vrot.slane %v1003, %v1011
      %v1047 = vunpack.c.l.b16 %v971
      %v1048 = vunpack.c.h.b16 %v971
      %v1049 = vunpack.c.l.b16 %v972
      %v1050 = vunpack.c.h.b16 %v972
      %v1051 = vunpack.c.l.b16 %v973
      %v1052 = vunpack.c.h.b16 %v973
      %v1053 = vunpack.c.l.b16 %v974
      %v1054 = vunpack.c.h.b16 %v974
      %v1055 = vunpack.c.l.b16 %v975
      %v1056 = vunpack.c.h.b16 %v975
      %v1057 = vunpack.c.l.b16 %v976
      %v1058 = vunpack.c.h.b16 %v976
      %v1059 = vunpack.c.l.b16 %v977
      %v1060 = vunpack.c.h.b16 %v977
      %v1061 = vunpack.c.l.b16 %v978
      %v1062 = vunpack.c.h.b16 %v978
      %v1063 = vunpack.c.l.b16 %v979
      %v1064 = vunpack.c.h.b16 %v979
      %v1065 = vunpack.c.l.b16 %v980
      %v1066 = vunpack.c.h.b16 %v980
      %v1067 = vunpack.c.l.b16 %v981
      %v1068 = vunpack.c.h.b16 %v981
      %v1069 = vunpack.c.l.b16 %v982
      %v1070 = vunpack.c.h.b16 %v982
      %v1071 = vunpack.c.l.b16 %v983
      %v1072 = vunpack.c.h.b16 %v983
      %v1073 = vunpack.c.l.b16 %v984
      %v1074 = vunpack.c.h.b16 %v984
      %v1075 = vunpack.c.l.b16 %v985
      %v1076 = vunpack.c.h.b16 %v985
      %v1077 = vunpack.c.l.b16 %v986
      %v1078 = vunpack.c.h.b16 %v986
      %v1079 = vunpack.c.l.b16 %v987
      %v1080 = vunpack.c.h.b16 %v987
      %v1081 = vunpack.c.l.b16 %v988
      %v1082 = vunpack.c.h.b16 %v988
      %v1083 = vunpack.c.l.b16 %v989
      %v1084 = vunpack.c.h.b16 %v989
      %v1085 = vunpack.c.l.b16 %v990
      %v1086 = vunpack.c.h.b16 %v990
      %v1087 = vunpack.c.l.b16 %v991
      %v1088 = vunpack.c.h.b16 %v991
      %v1089 = vunpack.c.l.b16 %v992
      %v1090 = vunpack.c.h.b16 %v992
      %v1091 = vunpack.c.l.b16 %v993
      %v1092 = vunpack.c.h.b16 %v993
      %v1093 = vunpack.c.l.b16 %v994
      %v1094 = vunpack.c.h.b16 %v994
      %v1095 = vunpack.c.l.b16 %v995
      %v1096 = vunpack.c.h.b16 %v995
      %v1097 = vunpack.c.l.b16 %v996
      %v1098 = vunpack.c.h.b16 %v996
      %v1099 = vunpack.c.l.b16 %v997
      %v1100 = vunpack.c.h.b16 %v997
      %v1101 = vunpack.c.l.b16 %v998
      %v1102 = vunpack.c.h.b16 %v998
      %v1103 = vunpack.c.l.b16 %v999
      %v1104 = vunpack.c.h.b16 %v999
      %v1105 = vunpack.c.l.b16 %v1000
      %v1106 = vunpack.c.h.b16 %v1000
      %v1107 = vunpack.c.l.b16 %v1001
      %v1108 = vunpack.c.h.b16 %v1001
      %v1109 = vunpack.c.l.b16 %v1002
      %v1110 = vunpack.c.h.b16 %v1002
      %v1111 = vpack.c.b16 %v1049, %v1047
      %v1112 = vpack.c.b16 %v1050, %v1048
      %v1113 = vpack.c.b16 %v1053, %v1051
      %v1114 = vpack.c.b16 %v1054, %v1052
      %v1115 = vpack.c.b16 %v1057, %v1055
      %v1116 = vpack.c.b16 %v1058, %v1056
      %v1117 = vpack.c.b16 %v1061, %v1059
      %v1118 = vpack.c.b16 %v1062, %v1060
      %v1119 = vpack.c.b16 %v1065, %v1063
      %v1120 = vpack.c.b16 %v1066, %v1064
      %v1121 = vpack.c.b16 %v1069, %v1067
      %v1122 = vpack.c.b16 %v1070, %v1068
      %v1123 = vpack.c.b16 %v1073, %v1071
      %v1124 = vpack.c.b16 %v1074, %v1072
      %v1125 = vpack.c.b16 %v1077, %v1075
      %v1126 = vpack.c.b16 %v1078, %v1076
      %v1127 = vpack.c.b16 %v1081, %v1079
      %v1128 = vpack.c.b16 %v1082, %v1080
      %v1129 = vpack.c.b16 %v1085, %v1083
      %v1130 = vpack.c.b16 %v1086, %v1084
      %v1131 = vpack.c.b16 %v1089, %v1087
      %v1132 = vpack.c.b16 %v1090, %v1088
      %v1133 = vpack.c.b16 %v1093, %v1091
      %v1134 = vpack.c.b16 %v1094, %v1092
      %v1135 = vpack.c.b16 %v1097, %v1095
      %v1136 = vpack.c.b16 %v1098, %v1096
      %v1137 = vpack.c.b16 %v1101, %v1099
      %v1138 = vpack.c.b16 %v1102, %v1100
      %v1139 = vpack.c.b16 %v1105, %v1103
      %v1140 = vpack.c.b16 %v1106, %v1104
      %v1141 = vpack.c.b16 %v1109, %v1107
      %v1142 = vpack.c.b16 %v1110, %v1108
      %1175 = vmatprep.subr.bf16.mxu0 %v1126
      %1176 = vmatpush1.bf16.msra.mxu0 %v1125
      %1177 = vmatprep.subr.bf16.mxu0 %v1124
      %1178 = vmatpush1.bf16.msra.mxu0 %v1123
      %1179 = vmatprep.subr.bf16.mxu0 %v1122
      %1180 = vmatpush1.bf16.msra.mxu0 %v1121
      %1181 = vmatprep.subr.bf16.mxu0 %v1120
      %1182 = vmatpush1.bf16.msra.mxu0 %v1119
      %1183 = vmatprep.subr.bf16.mxu0 %v1118
      %1184 = vmatpush1.bf16.msra.mxu0 %v1117
      %1185 = vmatprep.subr.bf16.mxu0 %v1116
      %1186 = vmatpush1.bf16.msra.mxu0 %v1115
      %1187 = vmatprep.subr.bf16.mxu0 %v1114
      %1188 = vmatpush1.bf16.msra.mxu0 %v1113
      %1189 = vmatprep.subr.bf16.mxu0 %v1112
      %1190 = vmatpush1.bf16.msra.mxu0 %v1111
      %1191 = vmatprep.subr.bf16.mxu0 %v1142
      %1192 = vmatpush2.bf16.msra.mxu0 %v1141
      %1193 = vmatprep.subr.bf16.mxu0 %v1140
      %1194 = vmatpush2.bf16.msra.mxu0 %v1139
      %1195 = vmatprep.subr.bf16.mxu0 %v1138
      %1196 = vmatpush2.bf16.msra.mxu0 %v1137
      %1197 = vmatprep.subr.bf16.mxu0 %v1136
      %1198 = vmatpush2.bf16.msra.mxu0 %v1135
      %1199 = vmatprep.subr.bf16.mxu0 %v1134
      %1200 = vmatpush2.bf16.msra.mxu0 %v1133
      %1201 = vmatprep.subr.bf16.mxu0 %v1132
      %1202 = vmatpush2.bf16.msra.mxu0 %v1131
      %1203 = vmatprep.subr.bf16.mxu0 %v1130
      %1204 = vmatpush2.bf16.msra.mxu0 %v1129
      %1205 = vmatprep.subr.bf16.mxu0 %v1128
      %1206 = vmatpush2.bf16.msra.mxu0 %v1127
      %1207 = vmatprep.mubr.bf16.mxu0 %v970
      %1208 = vmatmul.mubr.bf16.gmra.mxu0 %v969
      %v1209 = vpop.f32.mrf.mxu0
      %v1210 = vadd.f32 %v1008, %v1209
      %v1211 = vpop.f32.mrf.mxu0
      %v1212 = vadd.f32 %v1012, %v1211
      %v1213 = vpop.f32.mrf.mxu0
      %v1214 = vadd.f32 %v1008, %v1213
      %v1215 = vpop.f32.mrf.mxu0
      %v1216 = vadd.f32 %v1012, %v1215
      %1217 = vdwg.mxu0
      %v1218 = vadd.f32 %v1210, %v965
      %v1219 = vadd.f32 %v1212, %v966
      %v1220 = vadd.f32 %v1214, %v967
      %v1221 = vadd.f32 %v1216, %v968
      %v1222 = vmax.f32 %v1218, 0.0
      %v1223 = vmax.f32 %v1219, 0.0
      %v1224 = vmax.f32 %v1220, 0.0
      %v1225 = vmax.f32 %v1221, 0.0
      %v1226 = vpack.c.bf16 %v1224, %v1222
      %v1227 = vpack.c.bf16 %v1225, %v1223
      %v1228 = vld [vmem:[%s5] sm:$0xff]
      %v1229 = vld [vmem:[%s5 + $0x8] sm:$0xff]
      %v1230 = vld [vmem:[%s5 + $0x10] sm:$0xff]
      %v1231 = vld [vmem:[%s5 + $0x18] sm:$0xff]
      %v1232 = vld [vmem:[%s5 + $0x20] sm:$0xff]
      %v1233 = vld [vmem:[%s5 + $0x28] sm:$0xff]
      %v1234 = vld [vmem:[%s5 + $0x30] sm:$0xff]
      %v1235 = vld [vmem:[%s5 + $0x38] sm:$0xff]
      %v1236 = vld [vmem:[%s5 + $0x40] sm:$0xff]
      %v1237 = vld [vmem:[%s5 + $0x48] sm:$0xff]
      %v1238 = vld [vmem:[%s5 + $0x50] sm:$0xff]
      %v1239 = vld [vmem:[%s5 + $0x58] sm:$0xff]
      %v1240 = vld [vmem:[%s5 + $0x60] sm:$0xff]
      %v1241 = vld [vmem:[%s5 + $0x68] sm:$0xff]
      %v1242 = vld [vmem:[%s5 + $0x70] sm:$0xff]
      %v1243 = vld [vmem:[%s5 + $0x78] sm:$0xff]
      %v1244 = vld [vmem:[%s5 + $0x80] sm:$0xff]
      %v1245 = vld [vmem:[%s5 + $0x88] sm:$0xff]
      %v1246 = vld [vmem:[%s5 + $0x90] sm:$0xff]
      %v1247 = vld [vmem:[%s5 + $0x98] sm:$0xff]
      %v1248 = vld [vmem:[%s5 + $0xa0] sm:$0xff]
      %v1249 = vld [vmem:[%s5 + $0xa8] sm:$0xff]
      %v1250 = vld [vmem:[%s5 + $0xb0] sm:$0xff]
      %v1251 = vld [vmem:[%s5 + $0xb8] sm:$0xff]
      %v1252 = vld [vmem:[%s5 + $0xc0] sm:$0xff]
      %v1253 = vld [vmem:[%s5 + $0xc8] sm:$0xff]
      %v1254 = vld [vmem:[%s5 + $0xd0] sm:$0xff]
      %v1255 = vld [vmem:[%s5 + $0xd8] sm:$0xff]
      %v1256 = vld [vmem:[%s5 + $0xe0] sm:$0xff]
      %v1257 = vld [vmem:[%s5 + $0xe8] sm:$0xff]
      %v1258 = vld [vmem:[%s5 + $0xf0] sm:$0xff]
      %v1259 = vld [vmem:[%s5 + $0xf8] sm:$0xff]
      %s1260 = scalar_lea.vmem %s5, 256
      %v1261 = vld [vmem:[%s1260] sm:$0xff]
      %v1262 = vld [vmem:[%s1260 + $0x8] sm:$0xff]
      %v1263 = vld [vmem:[%s1260 + $0x10] sm:$0xff]
      %v1264 = vld [vmem:[%s1260 + $0x18] sm:$0xff]
      %v1265 = vld [vmem:[%s1260 + $0x20] sm:$0xff]
      %v1266 = vld [vmem:[%s1260 + $0x28] sm:$0xff]
      %v1267 = vld [vmem:[%s1260 + $0x30] sm:$0xff]
      %v1268 = vld [vmem:[%s1260 + $0x38] sm:$0xff]
      %v1269 = vld [vmem:[%s1260 + $0x40] sm:$0xff]
      %v1270 = vld [vmem:[%s1260 + $0x48] sm:$0xff]
      %v1271 = vld [vmem:[%s1260 + $0x50] sm:$0xff]
      %v1272 = vld [vmem:[%s1260 + $0x58] sm:$0xff]
      %v1273 = vld [vmem:[%s1260 + $0x60] sm:$0xff]
      %v1274 = vld [vmem:[%s1260 + $0x68] sm:$0xff]
      %v1275 = vld [vmem:[%s1260 + $0x70] sm:$0xff]
      %v1276 = vld [vmem:[%s1260 + $0x78] sm:$0xff]
      %v1277 = vld [vmem:[%s1260 + $0x80] sm:$0xff]
      %v1278 = vld [vmem:[%s1260 + $0x88] sm:$0xff]
      %v1279 = vld [vmem:[%s1260 + $0x90] sm:$0xff]
      %v1280 = vld [vmem:[%s1260 + $0x98] sm:$0xff]
      %v1281 = vld [vmem:[%s1260 + $0xa0] sm:$0xff]
      %v1282 = vld [vmem:[%s1260 + $0xa8] sm:$0xff]
      %v1283 = vld [vmem:[%s1260 + $0xb0] sm:$0xff]
      %v1284 = vld [vmem:[%s1260 + $0xb8] sm:$0xff]
      %v1285 = vld [vmem:[%s1260 + $0xc0] sm:$0xff]
      %v1286 = vld [vmem:[%s1260 + $0xc8] sm:$0xff]
      %v1287 = vld [vmem:[%s1260 + $0xd0] sm:$0xff]
      %v1288 = vld [vmem:[%s1260 + $0xd8] sm:$0xff]
      %v1289 = vld [vmem:[%s1260 + $0xe0] sm:$0xff]
      %v1290 = vld [vmem:[%s1260 + $0xe8] sm:$0xff]
      %v1291 = vld [vmem:[%s1260 + $0xf0] sm:$0xff]
      %v1292 = vld [vmem:[%s1260 + $0xf8] sm:$0xff]
      %v1294 = vshrl.u32 %v1226, 16
      %v1296 = vshll.u32 %v1226, 16
      %v1298 = vrot.slane %v1296, 1
      %v1299 = vor.u32 %v1294, %v1298
      %v1301 = vshrl.u32 %v1227, 16
      %v1303 = vshll.u32 %v1227, 16
      %v1305 = vrot.slane %v1303, 1
      %v1306 = vor.u32 %v1301, %v1305
      %v1341 = vunpack.c.l.b16 %v1261
      %v1342 = vunpack.c.h.b16 %v1261
      %v1343 = vunpack.c.l.b16 %v1262
      %v1344 = vunpack.c.h.b16 %v1262
      %v1345 = vunpack.c.l.b16 %v1263
      %v1346 = vunpack.c.h.b16 %v1263
      %v1347 = vunpack.c.l.b16 %v1264
      %v1348 = vunpack.c.h.b16 %v1264
      %v1349 = vunpack.c.l.b16 %v1265
      %v1350 = vunpack.c.h.b16 %v1265
      %v1351 = vunpack.c.l.b16 %v1266
      %v1352 = vunpack.c.h.b16 %v1266
      %v1353 = vunpack.c.l.b16 %v1267
      %v1354 = vunpack.c.h.b16 %v1267
      %v1355 = vunpack.c.l.b16 %v1268
      %v1356 = vunpack.c.h.b16 %v1268
      %v1357 = vunpack.c.l.b16 %v1269
      %v1358 = vunpack.c.h.b16 %v1269
      %v1359 = vunpack.c.l.b16 %v1270
      %v1360 = vunpack.c.h.b16 %v1270
      %v1361 = vunpack.c.l.b16 %v1271
      %v1362 = vunpack.c.h.b16 %v1271
      %v1363 = vunpack.c.l.b16 %v1272
      %v1364 = vunpack.c.h.b16 %v1272
      %v1365 = vunpack.c.l.b16 %v1273
      %v1366 = vunpack.c.h.b16 %v1273
      %v1367 = vunpack.c.l.b16 %v1274
      %v1368 = vunpack.c.h.b16 %v1274
      %v1369 = vunpack.c.l.b16 %v1275
      %v1370 = vunpack.c.h.b16 %v1275
      %v1371 = vunpack.c.l.b16 %v1276
      %v1372 = vunpack.c.h.b16 %v1276
      %v1373 = vunpack.c.l.b16 %v1277
      %v1374 = vunpack.c.h.b16 %v1277
      %v1375 = vunpack.c.l.b16 %v1278
      %v1376 = vunpack.c.h.b16 %v1278
      %v1377 = vunpack.c.l.b16 %v1279
      %v1378 = vunpack.c.h.b16 %v1279
      %v1379 = vunpack.c.l.b16 %v1280
      %v1380 = vunpack.c.h.b16 %v1280
      %v1381 = vunpack.c.l.b16 %v1281
      %v1382 = vunpack.c.h.b16 %v1281
      %v1383 = vunpack.c.l.b16 %v1282
      %v1384 = vunpack.c.h.b16 %v1282
      %v1385 = vunpack.c.l.b16 %v1283
      %v1386 = vunpack.c.h.b16 %v1283
      %v1387 = vunpack.c.l.b16 %v1284
      %v1388 = vunpack.c.h.b16 %v1284
      %v1389 = vunpack.c.l.b16 %v1285
      %v1390 = vunpack.c.h.b16 %v1285
      %v1391 = vunpack.c.l.b16 %v1286
      %v1392 = vunpack.c.h.b16 %v1286
      %v1393 = vunpack.c.l.b16 %v1287
      %v1394 = vunpack.c.h.b16 %v1287
      %v1395 = vunpack.c.l.b16 %v1288
      %v1396 = vunpack.c.h.b16 %v1288
      %v1397 = vunpack.c.l.b16 %v1289
      %v1398 = vunpack.c.h.b16 %v1289
      %v1399 = vunpack.c.l.b16 %v1290
      %v1400 = vunpack.c.h.b16 %v1290
      %v1401 = vunpack.c.l.b16 %v1291
      %v1402 = vunpack.c.h.b16 %v1291
      %v1403 = vunpack.c.l.b16 %v1292
      %v1404 = vunpack.c.h.b16 %v1292
      %v1405 = vpack.c.b16 %v1343, %v1341
      %v1406 = vpack.c.b16 %v1344, %v1342
      %v1407 = vpack.c.b16 %v1347, %v1345
      %v1408 = vpack.c.b16 %v1348, %v1346
      %v1409 = vpack.c.b16 %v1351, %v1349
      %v1410 = vpack.c.b16 %v1352, %v1350
      %v1411 = vpack.c.b16 %v1355, %v1353
      %v1412 = vpack.c.b16 %v1356, %v1354
      %v1413 = vpack.c.b16 %v1359, %v1357
      %v1414 = vpack.c.b16 %v1360, %v1358
      %v1415 = vpack.c.b16 %v1363, %v1361
      %v1416 = vpack.c.b16 %v1364, %v1362
      %v1417 = vpack.c.b16 %v1367, %v1365
      %v1418 = vpack.c.b16 %v1368, %v1366
      %v1419 = vpack.c.b16 %v1371, %v1369
      %v1420 = vpack.c.b16 %v1372, %v1370
      %v1421 = vpack.c.b16 %v1375, %v1373
      %v1422 = vpack.c.b16 %v1376, %v1374
      %v1423 = vpack.c.b16 %v1379, %v1377
      %v1424 = vpack.c.b16 %v1380, %v1378
      %v1425 = vpack.c.b16 %v1383, %v1381
      %v1426 = vpack.c.b16 %v1384, %v1382
      %v1427 = vpack.c.b16 %v1387, %v1385
      %v1428 = vpack.c.b16 %v1388, %v1386
      %v1429 = vpack.c.b16 %v1391, %v1389
      %v1430 = vpack.c.b16 %v1392, %v1390
      %v1431 = vpack.c.b16 %v1395, %v1393
      %v1432 = vpack.c.b16 %v1396, %v1394
      %v1433 = vpack.c.b16 %v1399, %v1397
      %v1434 = vpack.c.b16 %v1400, %v1398
      %v1435 = vpack.c.b16 %v1403, %v1401
      %v1436 = vpack.c.b16 %v1404, %v1402
      %1469 = vmatprep.subr.bf16.mxu0 %v1420
      %1470 = vmatpush1.bf16.msra.mxu0 %v1419
      %1471 = vmatprep.subr.bf16.mxu0 %v1418
      %1472 = vmatpush1.bf16.msra.mxu0 %v1417
      %1473 = vmatprep.subr.bf16.mxu0 %v1416
      %1474 = vmatpush1.bf16.msra.mxu0 %v1415
      %1475 = vmatprep.subr.bf16.mxu0 %v1414
      %1476 = vmatpush1.bf16.msra.mxu0 %v1413
      %1477 = vmatprep.subr.bf16.mxu0 %v1412
      %1478 = vmatpush1.bf16.msra.mxu0 %v1411
      %1479 = vmatprep.subr.bf16.mxu0 %v1410
      %1480 = vmatpush1.bf16.msra.mxu0 %v1409
      %1481 = vmatprep.subr.bf16.mxu0 %v1408
      %1482 = vmatpush1.bf16.msra.mxu0 %v1407
      %1483 = vmatprep.subr.bf16.mxu0 %v1406
      %1484 = vmatpush1.bf16.msra.mxu0 %v1405
      %1485 = vmatprep.subr.bf16.mxu0 %v1436
      %1486 = vmatpush2.bf16.msra.mxu0 %v1435
      %1487 = vmatprep.subr.bf16.mxu0 %v1434
      %1488 = vmatpush2.bf16.msra.mxu0 %v1433
      %1489 = vmatprep.subr.bf16.mxu0 %v1432
      %1490 = vmatpush2.bf16.msra.mxu0 %v1431
      %1491 = vmatprep.subr.bf16.mxu0 %v1430
      %1492 = vmatpush2.bf16.msra.mxu0 %v1429
      %1493 = vmatprep.subr.bf16.mxu0 %v1428
      %1494 = vmatpush2.bf16.msra.mxu0 %v1427
      %1495 = vmatprep.subr.bf16.mxu0 %v1426
      %1496 = vmatpush2.bf16.msra.mxu0 %v1425
      %1497 = vmatprep.subr.bf16.mxu0 %v1424
      %1498 = vmatpush2.bf16.msra.mxu0 %v1423
      %1499 = vmatprep.subr.bf16.mxu0 %v1422
      %1500 = vmatpush2.bf16.msra.mxu0 %v1421
      %1501 = vmatprep.mubr.bf16.mxu0 %v1306
      %1502 = vmatmul.mubr.bf16.gmra.mxu0 %v1299
      %v1503 = vpop.f32.mrf.mxu0
      %v1504 = vadd.f32 0.0, %v1503
      %v1505 = vpop.f32.mrf.mxu0
      %v1506 = vadd.f32 0.0, %v1505
      %v1507 = vpop.f32.mrf.mxu0
      %v1508 = vadd.f32 0.0, %v1507
      %v1509 = vpop.f32.mrf.mxu0
      %v1510 = vadd.f32 0.0, %v1509
      %1511 = vdwg.mxu0
      %v1544 = vunpack.c.l.b16 %v1228
      %v1545 = vunpack.c.h.b16 %v1228
      %v1546 = vunpack.c.l.b16 %v1229
      %v1547 = vunpack.c.h.b16 %v1229
      %v1548 = vunpack.c.l.b16 %v1230
      %v1549 = vunpack.c.h.b16 %v1230
      %v1550 = vunpack.c.l.b16 %v1231
      %v1551 = vunpack.c.h.b16 %v1231
      %v1552 = vunpack.c.l.b16 %v1232
      %v1553 = vunpack.c.h.b16 %v1232
      %v1554 = vunpack.c.l.b16 %v1233
      %v1555 = vunpack.c.h.b16 %v1233
      %v1556 = vunpack.c.l.b16 %v1234
      %v1557 = vunpack.c.h.b16 %v1234
      %v1558 = vunpack.c.l.b16 %v1235
      %v1559 = vunpack.c.h.b16 %v1235
      %v1560 = vunpack.c.l.b16 %v1236
      %v1561 = vunpack.c.h.b16 %v1236
      %v1562 = vunpack.c.l.b16 %v1237
      %v1563 = vunpack.c.h.b16 %v1237
      %v1564 = vunpack.c.l.b16 %v1238
      %v1565 = vunpack.c.h.b16 %v1238
      %v1566 = vunpack.c.l.b16 %v1239
      %v1567 = vunpack.c.h.b16 %v1239
      %v1568 = vunpack.c.l.b16 %v1240
      %v1569 = vunpack.c.h.b16 %v1240
      %v1570 = vunpack.c.l.b16 %v1241
      %v1571 = vunpack.c.h.b16 %v1241
      %v1572 = vunpack.c.l.b16 %v1242
      %v1573 = vunpack.c.h.b16 %v1242
      %v1574 = vunpack.c.l.b16 %v1243
      %v1575 = vunpack.c.h.b16 %v1243
      %v1576 = vunpack.c.l.b16 %v1244
      %v1577 = vunpack.c.h.b16 %v1244
      %v1578 = vunpack.c.l.b16 %v1245
      %v1579 = vunpack.c.h.b16 %v1245
      %v1580 = vunpack.c.l.b16 %v1246
      %v1581 = vunpack.c.h.b16 %v1246
      %v1582 = vunpack.c.l.b16 %v1247
      %v1583 = vunpack.c.h.b16 %v1247
      %v1584 = vunpack.c.l.b16 %v1248
      %v1585 = vunpack.c.h.b16 %v1248
      %v1586 = vunpack.c.l.b16 %v1249
      %v1587 = vunpack.c.h.b16 %v1249
      %v1588 = vunpack.c.l.b16 %v1250
      %v1589 = vunpack.c.h.b16 %v1250
      %v1590 = vunpack.c.l.b16 %v1251
      %v1591 = vunpack.c.h.b16 %v1251
      %v1592 = vunpack.c.l.b16 %v1252
      %v1593 = vunpack.c.h.b16 %v1252
      %v1594 = vunpack.c.l.b16 %v1253
      %v1595 = vunpack.c.h.b16 %v1253
      %v1596 = vunpack.c.l.b16 %v1254
      %v1597 = vunpack.c.h.b16 %v1254
      %v1598 = vunpack.c.l.b16 %v1255
      %v1599 = vunpack.c.h.b16 %v1255
      %v1600 = vunpack.c.l.b16 %v1256
      %v1601 = vunpack.c.h.b16 %v1256
      %v1602 = vunpack.c.l.b16 %v1257
      %v1603 = vunpack.c.h.b16 %v1257
      %v1604 = vunpack.c.l.b16 %v1258
      %v1605 = vunpack.c.h.b16 %v1258
      %v1606 = vunpack.c.l.b16 %v1259
      %v1607 = vunpack.c.h.b16 %v1259
      %v1608 = vpack.c.b16 %v1546, %v1544
      %v1609 = vpack.c.b16 %v1547, %v1545
      %v1610 = vpack.c.b16 %v1550, %v1548
      %v1611 = vpack.c.b16 %v1551, %v1549
      %v1612 = vpack.c.b16 %v1554, %v1552
      %v1613 = vpack.c.b16 %v1555, %v1553
      %v1614 = vpack.c.b16 %v1558, %v1556
      %v1615 = vpack.c.b16 %v1559, %v1557
      %v1616 = vpack.c.b16 %v1562, %v1560
      %v1617 = vpack.c.b16 %v1563, %v1561
      %v1618 = vpack.c.b16 %v1566, %v1564
      %v1619 = vpack.c.b16 %v1567, %v1565
      %v1620 = vpack.c.b16 %v1570, %v1568
      %v1621 = vpack.c.b16 %v1571, %v1569
      %v1622 = vpack.c.b16 %v1574, %v1572
      %v1623 = vpack.c.b16 %v1575, %v1573
      %v1624 = vpack.c.b16 %v1578, %v1576
      %v1625 = vpack.c.b16 %v1579, %v1577
      %v1626 = vpack.c.b16 %v1582, %v1580
      %v1627 = vpack.c.b16 %v1583, %v1581
      %v1628 = vpack.c.b16 %v1586, %v1584
      %v1629 = vpack.c.b16 %v1587, %v1585
      %v1630 = vpack.c.b16 %v1590, %v1588
      %v1631 = vpack.c.b16 %v1591, %v1589
      %v1632 = vpack.c.b16 %v1594, %v1592
      %v1633 = vpack.c.b16 %v1595, %v1593
      %v1634 = vpack.c.b16 %v1598, %v1596
      %v1635 = vpack.c.b16 %v1599, %v1597
      %v1636 = vpack.c.b16 %v1602, %v1600
      %v1637 = vpack.c.b16 %v1603, %v1601
      %v1638 = vpack.c.b16 %v1606, %v1604
      %v1639 = vpack.c.b16 %v1607, %v1605
      %1672 = vmatprep.subr.bf16.mxu0 %v1623
      %1673 = vmatpush1.bf16.msra.mxu0 %v1622
      %1674 = vmatprep.subr.bf16.mxu0 %v1621
      %1675 = vmatpush1.bf16.msra.mxu0 %v1620
      %1676 = vmatprep.subr.bf16.mxu0 %v1619
      %1677 = vmatpush1.bf16.msra.mxu0 %v1618
      %1678 = vmatprep.subr.bf16.mxu0 %v1617
      %1679 = vmatpush1.bf16.msra.mxu0 %v1616
      %1680 = vmatprep.subr.bf16.mxu0 %v1615
      %1681 = vmatpush1.bf16.msra.mxu0 %v1614
      %1682 = vmatprep.subr.bf16.mxu0 %v1613
      %1683 = vmatpush1.bf16.msra.mxu0 %v1612
      %1684 = vmatprep.subr.bf16.mxu0 %v1611
      %1685 = vmatpush1.bf16.msra.mxu0 %v1610
      %1686 = vmatprep.subr.bf16.mxu0 %v1609
      %1687 = vmatpush1.bf16.msra.mxu0 %v1608
      %1688 = vmatprep.subr.bf16.mxu0 %v1639
      %1689 = vmatpush2.bf16.msra.mxu0 %v1638
      %1690 = vmatprep.subr.bf16.mxu0 %v1637
      %1691 = vmatpush2.bf16.msra.mxu0 %v1636
      %1692 = vmatprep.subr.bf16.mxu0 %v1635
      %1693 = vmatpush2.bf16.msra.mxu0 %v1634
      %1694 = vmatprep.subr.bf16.mxu0 %v1633
      %1695 = vmatpush2.bf16.msra.mxu0 %v1632
      %1696 = vmatprep.subr.bf16.mxu0 %v1631
      %1697 = vmatpush2.bf16.msra.mxu0 %v1630
      %1698 = vmatprep.subr.bf16.mxu0 %v1629
      %1699 = vmatpush2.bf16.msra.mxu0 %v1628
      %1700 = vmatprep.subr.bf16.mxu0 %v1627
      %1701 = vmatpush2.bf16.msra.mxu0 %v1626
      %1702 = vmatprep.subr.bf16.mxu0 %v1625
      %1703 = vmatpush2.bf16.msra.mxu0 %v1624
      %1704 = vmatprep.mubr.bf16.mxu0 %v1227
      %1705 = vmatmul.mubr.bf16.gmra.mxu0 %v1226
      %v1706 = vpop.f32.mrf.mxu0
      %v1707 = vadd.f32 %v1504, %v1706
      %v1708 = vpop.f32.mrf.mxu0
      %v1709 = vadd.f32 %v1506, %v1708
      %v1710 = vpop.f32.mrf.mxu0
      %v1711 = vadd.f32 %v1508, %v1710
      %v1712 = vpop.f32.mrf.mxu0
      %v1713 = vadd.f32 %v1510, %v1712
      %1714 = vdwg.mxu0
      %s1715 = scalar_lea.vmem %s5, 512
      %v1716 = vld [vmem:[%s1715] sm:$0xff]
      %v1717 = vld [vmem:[%s1715 + $0x8] sm:$0xff]
      %v1718 = vld [vmem:[%s1715 + $0x10] sm:$0xff]
      %v1719 = vld [vmem:[%s1715 + $0x18] sm:$0xff]
      %v1720 = vld [vmem:[%s1715 + $0x20] sm:$0xff]
      %v1721 = vld [vmem:[%s1715 + $0x28] sm:$0xff]
      %v1722 = vld [vmem:[%s1715 + $0x30] sm:$0xff]
      %v1723 = vld [vmem:[%s1715 + $0x38] sm:$0xff]
      %v1724 = vld [vmem:[%s1715 + $0x40] sm:$0xff]
      %v1725 = vld [vmem:[%s1715 + $0x48] sm:$0xff]
      %v1726 = vld [vmem:[%s1715 + $0x50] sm:$0xff]
      %v1727 = vld [vmem:[%s1715 + $0x58] sm:$0xff]
      %v1728 = vld [vmem:[%s1715 + $0x60] sm:$0xff]
      %v1729 = vld [vmem:[%s1715 + $0x68] sm:$0xff]
      %v1730 = vld [vmem:[%s1715 + $0x70] sm:$0xff]
      %v1731 = vld [vmem:[%s1715 + $0x78] sm:$0xff]
      %v1732 = vld [vmem:[%s1715 + $0x80] sm:$0xff]
      %v1733 = vld [vmem:[%s1715 + $0x88] sm:$0xff]
      %v1734 = vld [vmem:[%s1715 + $0x90] sm:$0xff]
      %v1735 = vld [vmem:[%s1715 + $0x98] sm:$0xff]
      %v1736 = vld [vmem:[%s1715 + $0xa0] sm:$0xff]
      %v1737 = vld [vmem:[%s1715 + $0xa8] sm:$0xff]
      %v1738 = vld [vmem:[%s1715 + $0xb0] sm:$0xff]
      %v1739 = vld [vmem:[%s1715 + $0xb8] sm:$0xff]
      %v1740 = vld [vmem:[%s1715 + $0xc0] sm:$0xff]
      %v1741 = vld [vmem:[%s1715 + $0xc8] sm:$0xff]
      %v1742 = vld [vmem:[%s1715 + $0xd0] sm:$0xff]
      %v1743 = vld [vmem:[%s1715 + $0xd8] sm:$0xff]
      %v1744 = vld [vmem:[%s1715 + $0xe0] sm:$0xff]
      %v1745 = vld [vmem:[%s1715 + $0xe8] sm:$0xff]
      %v1746 = vld [vmem:[%s1715 + $0xf0] sm:$0xff]
      %v1747 = vld [vmem:[%s1715 + $0xf8] sm:$0xff]
      %v1750 = vrot.slane %v1226, 1
      %v1751 = vrot.slane %v1227, 1
      %v1786 = vunpack.c.l.b16 %v1716
      %v1787 = vunpack.c.h.b16 %v1716
      %v1788 = vunpack.c.l.b16 %v1717
      %v1789 = vunpack.c.h.b16 %v1717
      %v1790 = vunpack.c.l.b16 %v1718
      %v1791 = vunpack.c.h.b16 %v1718
      %v1792 = vunpack.c.l.b16 %v1719
      %v1793 = vunpack.c.h.b16 %v1719
      %v1794 = vunpack.c.l.b16 %v1720
      %v1795 = vunpack.c.h.b16 %v1720
      %v1796 = vunpack.c.l.b16 %v1721
      %v1797 = vunpack.c.h.b16 %v1721
      %v1798 = vunpack.c.l.b16 %v1722
      %v1799 = vunpack.c.h.b16 %v1722
      %v1800 = vunpack.c.l.b16 %v1723
      %v1801 = vunpack.c.h.b16 %v1723
      %v1802 = vunpack.c.l.b16 %v1724
      %v1803 = vunpack.c.h.b16 %v1724
      %v1804 = vunpack.c.l.b16 %v1725
      %v1805 = vunpack.c.h.b16 %v1725
      %v1806 = vunpack.c.l.b16 %v1726
      %v1807 = vunpack.c.h.b16 %v1726
      %v1808 = vunpack.c.l.b16 %v1727
      %v1809 = vunpack.c.h.b16 %v1727
      %v1810 = vunpack.c.l.b16 %v1728
      %v1811 = vunpack.c.h.b16 %v1728
      %v1812 = vunpack.c.l.b16 %v1729
      %v1813 = vunpack.c.h.b16 %v1729
      %v1814 = vunpack.c.l.b16 %v1730
      %v1815 = vunpack.c.h.b16 %v1730
      %v1816 = vunpack.c.l.b16 %v1731
      %v1817 = vunpack.c.h.b16 %v1731
      %v1818 = vunpack.c.l.b16 %v1732
      %v1819 = vunpack.c.h.b16 %v1732
      %v1820 = vunpack.c.l.b16 %v1733
      %v1821 = vunpack.c.h.b16 %v1733
      %v1822 = vunpack.c.l.b16 %v1734
      %v1823 = vunpack.c.h.b16 %v1734
      %v1824 = vunpack.c.l.b16 %v1735
      %v1825 = vunpack.c.h.b16 %v1735
      %v1826 = vunpack.c.l.b16 %v1736
      %v1827 = vunpack.c.h.b16 %v1736
      %v1828 = vunpack.c.l.b16 %v1737
      %v1829 = vunpack.c.h.b16 %v1737
      %v1830 = vunpack.c.l.b16 %v1738
      %v1831 = vunpack.c.h.b16 %v1738
      %v1832 = vunpack.c.l.b16 %v1739
      %v1833 = vunpack.c.h.b16 %v1739
      %v1834 = vunpack.c.l.b16 %v1740
      %v1835 = vunpack.c.h.b16 %v1740
      %v1836 = vunpack.c.l.b16 %v1741
      %v1837 = vunpack.c.h.b16 %v1741
      %v1838 = vunpack.c.l.b16 %v1742
      %v1839 = vunpack.c.h.b16 %v1742
      %v1840 = vunpack.c.l.b16 %v1743
      %v1841 = vunpack.c.h.b16 %v1743
      %v1842 = vunpack.c.l.b16 %v1744
      %v1843 = vunpack.c.h.b16 %v1744
      %v1844 = vunpack.c.l.b16 %v1745
      %v1845 = vunpack.c.h.b16 %v1745
      %v1846 = vunpack.c.l.b16 %v1746
      %v1847 = vunpack.c.h.b16 %v1746
      %v1848 = vunpack.c.l.b16 %v1747
      %v1849 = vunpack.c.h.b16 %v1747
      %v1850 = vpack.c.b16 %v1788, %v1786
      %v1851 = vpack.c.b16 %v1789, %v1787
      %v1852 = vpack.c.b16 %v1792, %v1790
      %v1853 = vpack.c.b16 %v1793, %v1791
      %v1854 = vpack.c.b16 %v1796, %v1794
      %v1855 = vpack.c.b16 %v1797, %v1795
      %v1856 = vpack.c.b16 %v1800, %v1798
      %v1857 = vpack.c.b16 %v1801, %v1799
      %v1858 = vpack.c.b16 %v1804, %v1802
      %v1859 = vpack.c.b16 %v1805, %v1803
      %v1860 = vpack.c.b16 %v1808, %v1806
      %v1861 = vpack.c.b16 %v1809, %v1807
      %v1862 = vpack.c.b16 %v1812, %v1810
      %v1863 = vpack.c.b16 %v1813, %v1811
      %v1864 = vpack.c.b16 %v1816, %v1814
      %v1865 = vpack.c.b16 %v1817, %v1815
      %v1866 = vpack.c.b16 %v1820, %v1818
      %v1867 = vpack.c.b16 %v1821, %v1819
      %v1868 = vpack.c.b16 %v1824, %v1822
      %v1869 = vpack.c.b16 %v1825, %v1823
      %v1870 = vpack.c.b16 %v1828, %v1826
      %v1871 = vpack.c.b16 %v1829, %v1827
      %v1872 = vpack.c.b16 %v1832, %v1830
      %v1873 = vpack.c.b16 %v1833, %v1831
      %v1874 = vpack.c.b16 %v1836, %v1834
      %v1875 = vpack.c.b16 %v1837, %v1835
      %v1876 = vpack.c.b16 %v1840, %v1838
      %v1877 = vpack.c.b16 %v1841, %v1839
      %v1878 = vpack.c.b16 %v1844, %v1842
      %v1879 = vpack.c.b16 %v1845, %v1843
      %v1880 = vpack.c.b16 %v1848, %v1846
      %v1881 = vpack.c.b16 %v1849, %v1847
      %1914 = vmatprep.subr.bf16.mxu0 %v1865
      %1915 = vmatpush1.bf16.msra.mxu0 %v1864
      %1916 = vmatprep.subr.bf16.mxu0 %v1863
      %1917 = vmatpush1.bf16.msra.mxu0 %v1862
      %1918 = vmatprep.subr.bf16.mxu0 %v1861
      %1919 = vmatpush1.bf16.msra.mxu0 %v1860
      %1920 = vmatprep.subr.bf16.mxu0 %v1859
      %1921 = vmatpush1.bf16.msra.mxu0 %v1858
      %1922 = vmatprep.subr.bf16.mxu0 %v1857
      %1923 = vmatpush1.bf16.msra.mxu0 %v1856
      %1924 = vmatprep.subr.bf16.mxu0 %v1855
      %1925 = vmatpush1.bf16.msra.mxu0 %v1854
      %1926 = vmatprep.subr.bf16.mxu0 %v1853
      %1927 = vmatpush1.bf16.msra.mxu0 %v1852
      %1928 = vmatprep.subr.bf16.mxu0 %v1851
      %1929 = vmatpush1.bf16.msra.mxu0 %v1850
      %1930 = vmatprep.subr.bf16.mxu0 %v1881
      %1931 = vmatpush2.bf16.msra.mxu0 %v1880
      %1932 = vmatprep.subr.bf16.mxu0 %v1879
      %1933 = vmatpush2.bf16.msra.mxu0 %v1878
      %1934 = vmatprep.subr.bf16.mxu0 %v1877
      %1935 = vmatpush2.bf16.msra.mxu0 %v1876
      %1936 = vmatprep.subr.bf16.mxu0 %v1875
      %1937 = vmatpush2.bf16.msra.mxu0 %v1874
      %1938 = vmatprep.subr.bf16.mxu0 %v1873
      %1939 = vmatpush2.bf16.msra.mxu0 %v1872
      %1940 = vmatprep.subr.bf16.mxu0 %v1871
      %1941 = vmatpush2.bf16.msra.mxu0 %v1870
      %1942 = vmatprep.subr.bf16.mxu0 %v1869
      %1943 = vmatpush2.bf16.msra.mxu0 %v1868
      %1944 = vmatprep.subr.bf16.mxu0 %v1867
      %1945 = vmatpush2.bf16.msra.mxu0 %v1866
      %1946 = vmatprep.mubr.bf16.mxu0 %v1751
      %1947 = vmatmul.mubr.bf16.gmra.mxu0 %v1750
      %v1948 = vpop.f32.mrf.mxu0
      %v1949 = vadd.f32 0.0, %v1948
      %v1950 = vpop.f32.mrf.mxu0
      %v1951 = vadd.f32 0.0, %v1950
      %v1952 = vpop.f32.mrf.mxu0
      %v1953 = vadd.f32 0.0, %v1952
      %v1954 = vpop.f32.mrf.mxu0
      %v1955 = vadd.f32 0.0, %v1954
      %1956 = vdwg.mxu0
      %v1957 = vadd.f32 %v1707, %v1949
      %v1958 = vadd.f32 %v1709, %v1951
      %v1959 = vadd.f32 %v1711, %v1953
      %v1960 = vadd.f32 %v1713, %v1955
      %v1961 = vld [vmem:[%s6] sm:$0x3]
      %v1963 = vlaneseq
      %v1964 = vshrl.u32 %v1963, 7
      %v1965 = vsub.s32 0, %v1964
      %v1966 = vrot.slane %v1961, %v1965
      %v1967 = vlaneseq
      %v1968 = vshrl.u32 %v1967, 7
      %v1969 = vsub.s32 1, %v1968
      %v1970 = vrot.slane %v1961, %v1969
      %v1973 = vadd.f32 %v1957, %v1966
      %v1974 = vadd.f32 %v1958, %v1970
      %v1975 = vadd.f32 %v1959, %v1966
      %v1976 = vadd.f32 %v1960, %v1970
      %vm1981 = vcmask 1045504
      %v1982 = vrot.slane %v1222, 2
      %v1983 = vrot.slane %v1224, 2
      %v1984 = vsel %vm1981, %v1982, %v1983
      %v1985 = vrot.slane %v1223, 2
      %v1986 = vrot.slane %v1225, 2
      %v1987 = vsel %vm1981, %v1985, %v1986
      %v1992 = vadd.f32 %v1973, %v1984
      %v1993 = vadd.f32 %v1974, %v1987
      %v1994 = vadd.f32 %v1975, %v1983
      %v1995 = vadd.f32 %v1976, %v1986
      %v1996 = vmax.f32 %v1992, 0.0
      %v1997 = vmax.f32 %v1993, 0.0
      %v1998 = vmax.f32 %v1994, 0.0
      %v1999 = vmax.f32 %v1995, 0.0
      %v2000 = vadd.f32 %v1996, %v1997
      %2001 = vadd.xlane.f32.xlu0 %v2000
      %v2002 = vpop.xlane.xlu0 %2001
      %vm2003 = vcmask 1043456
      %v2004 = vsel %vm2003, %v1998, 0.0
      %v2005 = vsel %vm2003, %v1999, 0.0
      %v2006 = vadd.f32 %v2004, %v2005
      %2007 = vadd.xlane.f32.xlu0 %v2006
      %v2008 = vpop.xlane.xlu0 %2007
      %v2009 = vmul.f32 %v2002, 0.00390625
      %v2010 = vmul.f32 %v2008, 0.00390625
      %v2011 = vsub.f32 %v1996, %v2009
      %v2012 = vsub.f32 %v1997, %v2009
      %v2013 = vsub.f32 %v1998, %v2010
      %v2014 = vsub.f32 %v1999, %v2010
      %v2015 = vmul.f32 %v2011, %v2011
      %v2016 = vmul.f32 %v2012, %v2012
      %v2017 = vmul.f32 %v2013, %v2013
      %v2018 = vmul.f32 %v2014, %v2014
      %v2019 = vadd.f32 %v2015, %v2016
      %2020 = vadd.xlane.f32.xlu0 %v2019
      %v2021 = vpop.xlane.xlu0 %2020
      %v2022 = vsel %vm2003, %v2017, 0.0
      %v2023 = vsel %vm2003, %v2018, 0.0
      %v2024 = vadd.f32 %v2022, %v2023
      %2025 = vadd.xlane.f32.xlu0 %v2024
      %v2026 = vpop.xlane.xlu0 %2025
      %v2027 = vmul.f32 %v2021, 0.00390625
      %v2028 = vmul.f32 %v2026, 0.00390625
      %v2029 = vadd.f32 %v2027, 1e-05
      %v2030 = vadd.f32 %v2028, 1e-05
      %v2031 = vrsqrt.pop %v2029
      %v2032 = vrsqrt.pop %v2030
      %v2033 = vmul.f32 %v2011, %v2031
      %v2034 = vmul.f32 %v2012, %v2031
      %v2035 = vmul.f32 %v2013, %v2032
      %v2036 = vmul.f32 %v2014, %v2032
      %v2037 = vld [vmem:[%s7] sm:$0x3]
      %v2039 = vlaneseq
      %v2040 = vshrl.u32 %v2039, 7
      %v2041 = vsub.s32 0, %v2040
      %v2042 = vrot.slane %v2037, %v2041
      %v2043 = vlaneseq
      %v2044 = vshrl.u32 %v2043, 7
      %v2045 = vsub.s32 1, %v2044
      %v2046 = vrot.slane %v2037, %v2045
      %v2049 = vmul.f32 %v2033, %v2042
      %v2050 = vmul.f32 %v2034, %v2046
      %v2051 = vmul.f32 %v2035, %v2042
      %v2052 = vmul.f32 %v2036, %v2046
      %v2053 = vld [vmem:[%s8] sm:$0x3]
      %v2055 = vlaneseq
      %v2056 = vshrl.u32 %v2055, 7
      %v2057 = vsub.s32 0, %v2056
      %v2058 = vrot.slane %v2053, %v2057
      %v2059 = vlaneseq
      %v2060 = vshrl.u32 %v2059, 7
      %v2061 = vsub.s32 1, %v2060
      %v2062 = vrot.slane %v2053, %v2061
      %v2065 = vadd.f32 %v2049, %v2058
      %v2066 = vadd.f32 %v2050, %v2062
      %v2067 = vadd.f32 %v2051, %v2058
      %v2068 = vadd.f32 %v2052, %v2062
      %2069 = vst [vmem:[%s332] sm:$0xff] %v2065
      %2070 = vst [vmem:[%s332 + $0x8] sm:$0xff] %v2066
      %2071 = vst [vmem:[%s332 + $0x10] sm:$0xf] %v2067
      %2072 = vst [vmem:[%s332 + $0x18] sm:$0xf] %v2068
      %p2073 = scmp.lt.s32.totalorder %s20, 1
      %s2074 = scalar_select %p2073, %s20, 1
      %s2075 = smul.addr %s2074, 4
      %s2076 = smul.addr %s2075, 8
      %s2077 = scalar_lea.vmem %s9, %s2076
      // Predicated region
      $region57: #{_lambda_.1} parent=55 // pred_check
        %p2078 = pneg %p232
      $region58: #{_lambda_.1} parent=55 // pred_check_branch
        %2080 = sbr.rel (%p2078) target = $region60
      $region59: #{_lambda_.1} parent=55 // pred_region
        _
      $region60: #{_lambda_.1} parent=55 // pred_fallthru
        _
    $region56: #{_lambda_.1} parent=5 // pred_fallthru
      _
    %p2081 = scmp.le.s32.totalorder 2, %s15
    // Predicated region
    $region61: #{_lambda_.1} parent=5 // pred_check
      %p2082 = pneg %p2081
    $region62: #{_lambda_.1} parent=5 // pred_check_branch
      %2084 = sbr.rel (%p2082) target = $region64
    $region63: #{_lambda_.1} parent=5 // pred_region
      %s2085 = ssub.s32 %s15, 2
      // Predicated region
      $region65: #{_lambda_.1} parent=63 // pred_check
        %p2086 = pneg %p238
      $region66: #{_lambda_.1} parent=63 // pred_check_branch
        %2088 = sbr.rel (%p2086) target = $region68
      $region67: #{_lambda_.1} parent=63 // pred_region
        %p2089 = scmp.lt.s32.totalorder %s21, 1
        %s2090 = scalar_select %p2089, %s21, 1
        %s2091 = smul.addr %s2090, 4
        %s2092 = smul.addr %s2091, 8
        %s2093 = scalar_lea.vmem %s9, %s2092
      $region68: #{_lambda_.1} parent=63 // pred_fallthru
        _
    $region64: #{_lambda_.1} parent=5 // pred_fallthru
      _
  $region6: #{_lambda_.1} parent=0 // loop_footer
    %s19 = sadd.s32 1, %s15
  $region7: #{_lambda_.1} parent=0 // loop_footer_branch
    %14 = sbr.rel target = $region3
  $region8: #{_lambda_.1} parent=0 // loop_exit
    _

</llo_original>
